<compile_context>
chip_gen: v7x
topology: tpu7x:2x2x1
jax: 0.10.0
libtpu: 0.0.40
codegen_flags: <defaults>
</compile_context>

<pallas_src>
import functools

import jax
import jax.numpy as jnp
from jax.experimental import pallas as pl
from jax.experimental.pallas import tpu as pltpu

STATE_DIM = 2
HIDDEN = 64
ACTION_DIM = 4          # module default is 1 (degenerate); 4 gives a meaningful test
LANES = 128
VALUE_LANE = 64         # lane of the fused layer-3 output carrying the critic value
PACK_W = 8              # lane width of the packed per-row input / output slabs
X0_COL, X1_COL = 6, 7   # columns of the packed input slab carrying the state
MAX_BLOCK_B = 512       # upper cap on batch rows per grid step (review: 256-512)


def actor_critic_kernel(action_dim, value_lane,
                        xn_ref, p_ref, w2_ref, w3_ref, out_ref):
    B = xn_ref.shape[0]
    xn = xn_ref[...]                            # [B, 8]: lanes [0,action_dim)=Gumbel,
                                                # lanes 6,7 = state (x0, x1)
    x0 = xn[:, X0_COL:X0_COL + 1]               # [B, 1]
    x1 = xn[:, X1_COL:X1_COL + 1]               # [B, 1]

    # consolidated small params: rows 0-1 = w1, 2 = b1, 3 = b2, 4 = b3
    w1r0 = p_ref[0:1, :]
    w1r1 = p_ref[1:2, :]
    b1 = p_ref[2:3, :]
    b2 = p_ref[3:4, :]
    b3 = p_ref[4:5, :]

    # ---- fused actor+critic MLP (block-diagonal weights) --------------------
    # layer 1: K = state_dim = 2 contraction as two VPU broadcast FMAs (no MXU)
    h1 = jnp.maximum(x0 * w1r0 + x1 * w1r1 + b1, 0.0)                 # [B, 128]
    # layers 2/3: bf16 MXU matmuls with f32 accumulation
    h2 = jnp.maximum(
        jnp.dot(h1.astype(jnp.bfloat16), w2_ref[...],
                preferred_element_type=jnp.float32) + b2, 0.0)        # [B, 128]
    y3 = jnp.dot(h2.astype(jnp.bfloat16), w3_ref[...],
                 preferred_element_type=jnp.float32) + b3             # [B, 128]

    value = y3[:, value_lane:value_lane + 1]                          # [B, 1] critic(x)

    lane = jax.lax.broadcasted_iota(jnp.int32, (B, LANES), 1)
    valid = lane < action_dim
    neg_big = jnp.float32(-1e30)

    # actor softmax (== raw_actor_output of the PyTorch module)
    masked = jnp.where(valid, y3, neg_big)
    m = jnp.max(masked, axis=-1, keepdims=True)
    e = jnp.where(valid, jnp.exp(masked - m), 0.0)
    probs = e / jnp.sum(e, axis=-1, keepdims=True)                    # [B, 128]
    # TODO(synk): pl.reciprocal(approx=True) would shave the divide refinement on
    # TPU but has an uncertain interpret-mode path, so a plain divide is used.

    # Categorical(logits=probs): logsumexp of probs (probs in [0,1] -> no max shift)
    ez = jnp.where(valid, jnp.exp(probs), 0.0)
    log_z = jnp.log(jnp.sum(ez, axis=-1, keepdims=True))              # [B, 1]

    # Gumbel-max sample over logits=probs; noise sits in lanes [0,action_dim) of xn
    lane8 = jax.lax.broadcasted_iota(jnp.int32, (B, PACK_W), 1)
    valid8 = lane8 < action_dim
    scores = jnp.where(valid8, probs[:, :PACK_W] + xn, neg_big)       # [B, 8]
    smax = jnp.max(scores, axis=-1, keepdims=True)
    idx = jnp.where((scores == smax) & valid8,
                    lane8.astype(jnp.float32), jnp.float32(PACK_W))
    action_f = jnp.minimum(jnp.min(idx, axis=-1, keepdims=True),
                           jnp.float32(action_dim - 1))               # [B, 1]
    action = action_f.astype(jnp.int32)

    # log_prob(action) = probs[action] - logsumexp(probs)
    p_sel = jnp.sum(jnp.where(lane8 == action, probs[:, :PACK_W], 0.0),
                    axis=-1, keepdims=True)                           # [B, 1]
    logp = p_sel - log_z                                              # [B, 1]

    # packed lane-dense output slab: lane0 = value, lane1 = logp, lane2 = action
    out_ref[...] = jnp.where(lane8 == 0, value,
                   jnp.where(lane8 == 1, logp,
                   jnp.where(lane8 == 2, action_f, 0.0)))


def init_linear(key, fan_in, fan_out):
    # PyTorch default nn.Linear init: U(-1/sqrt(fan_in), 1/sqrt(fan_in))
    kw, kb = jax.random.split(key)
    bound = 1.0 / jnp.sqrt(jnp.float32(fan_in))
    w = jax.random.uniform(kw, (fan_in, fan_out), jnp.float32, -bound, bound)
    b = jax.random.uniform(kb, (fan_out,), jnp.float32, -bound, bound)
    return w, b


def _pack_fused_params(params, action_dim):
    """Block-diagonal packing: actor in lanes [0,64), critic in lanes [64,128).
    Small tensors (w1, b1, b2, b3) are consolidated into one [8,128] f32 block."""
    (aw1, ab1), (aw2, ab2), (aw3, ab3), (cw1, cb1), (cw2, cb2), (cw3, cb3) = params

    p_small = jnp.zeros((PACK_W, LANES), jnp.float32)
    p_small = p_small.at[0:STATE_DIM, :HIDDEN].set(aw1)
    p_small = p_small.at[0:STATE_DIM, HIDDEN:2 * HIDDEN].set(cw1)
    p_small = p_small.at[2, :HIDDEN].set(ab1).at[2, HIDDEN:2 * HIDDEN].set(cb1)
    p_small = p_small.at[3, :HIDDEN].set(ab2).at[3, HIDDEN:2 * HIDDEN].set(cb2)
    p_small = p_small.at[4, :action_dim].set(ab3).at[4, VALUE_LANE].set(cb3[0])

    w2 = jnp.zeros((LANES, LANES), jnp.float32)
    w2 = w2.at[:HIDDEN, :HIDDEN].set(aw2)
    w2 = w2.at[HIDDEN:2 * HIDDEN, HIDDEN:2 * HIDDEN].set(cw2)
    w3 = jnp.zeros((LANES, LANES), jnp.float32)
    w3 = w3.at[:HIDDEN, :action_dim].set(aw3)
    w3 = w3.at[HIDDEN:2 * HIDDEN, VALUE_LANE:VALUE_LANE + 1].set(cw3)

    # bf16 for the MXU layers; layer 1 / biases stay f32 (VPU path, f32 adds).
    return p_small, w2.astype(jnp.bfloat16), w3.astype(jnp.bfloat16)


def _pick_block_b(batch):
    if batch <= 16:
        return batch
    bb = min(MAX_BLOCK_B, max(8, batch // 2))   # >= 2 grid steps so v7x uses both TCs
    bb -= bb % 8
    while batch % bb:
        bb -= 8
    return bb


def actor_critic_forward(x, params, key, action_dim=ACTION_DIM, block_b=None):
    B = x.shape[0]
    assert B % 8 == 0, "batch must be a multiple of 8 (sublane tile)"
    assert action_dim <= X0_COL, "packed input slab supports action_dim <= 6"
    if block_b is None:
        block_b = _pick_block_b(B)
    assert B % block_b == 0

    # Host-side Gumbel noise for Gumbel-max sampling, packed with the state into
    # one lane-dense [B, 8] slab (lanes [0,action_dim) = noise, lanes 6,7 = state).
    # TODO(synk): pltpu.prng_* on-chip noise would avoid this 32 B/row DMA, but it
    # has no interpret/CPU lowering, so noise comes from jax.random instead.
    gumbel = jax.random.gumbel(key, (B, action_dim), jnp.float32)
    xn = jnp.zeros((B, PACK_W), jnp.float32)
    xn = xn.at[:, :action_dim].set(gumbel)
    xn = xn.at[:, X0_COL].set(x[:, 0]).at[:, X1_COL].set(x[:, 1])

    p_small, w2, w3 = _pack_fused_params(params, action_dim)
    kernel = functools.partial(actor_critic_kernel, action_dim, VALUE_LANE)
    pinned = lambda i: (0, 0)                    # weights stay VMEM-resident

    out = pl.pallas_call(
        kernel,
        out_shape=jax.ShapeDtypeStruct((B, PACK_W), jnp.float32),
        grid_spec=pltpu.PrefetchScalarGridSpec(
            num_scalar_prefetch=0,
            grid=(B // block_b,),
            in_specs=[
                pl.BlockSpec((block_b, PACK_W), lambda i: (i, 0)),   # state + noise
                pl.BlockSpec((PACK_W, LANES), pinned),               # w1/b1/b2/b3 (f32)
                pl.BlockSpec((LANES, LANES), pinned),                # w2 (bf16)
                pl.BlockSpec((LANES, LANES), pinned),                # w3 (bf16)
            ],
            out_specs=pl.BlockSpec((block_b, PACK_W), lambda i: (i, 0)),
        ),
        compiler_params=pltpu.CompilerParams(
            dimension_semantics=("parallel",)),
    )(xn, p_small, w2, w3)

    value = out[:, 0:1]                          # [B, 1] f32   critic(x)
    log_prob = out[:, 1]                         # [B]    f32   dist.log_prob(action)
    action = out[:, 2].astype(jnp.int32)         # [B]    int32 dist.sample()
    return action, log_prob, value


if __name__ == "__main__":
    key = jax.random.PRNGKey(0)
    k_x, k_noise, *k_layers = jax.random.split(key, 8)

    B = 512                                       # -> block_b=256, grid=(2,)
    x = jax.random.normal(k_x, (B, STATE_DIM), jnp.float32)

    params = (
        init_linear(k_layers[0], STATE_DIM, HIDDEN),
        init_linear(k_layers[1], HIDDEN, HIDDEN),
        init_linear(k_layers[2], HIDDEN, ACTION_DIM),
        init_linear(k_layers[3], STATE_DIM, HIDDEN),
        init_linear(k_layers[4], HIDDEN, HIDDEN),
        init_linear(k_layers[5], HIDDEN, 1),
    )

    action, log_prob, value = actor_critic_forward(x, params, k_noise)
    jax.block_until_ready((action, log_prob, value))

    # ---- shape / range checks -------------------------------------------
    assert action.shape == (B,) and action.dtype == jnp.int32
    assert log_prob.shape == (B,) and value.shape == (B, 1)
    assert bool(jnp.all((action >= 0) & (action < ACTION_DIM)))
    assert bool(jnp.all(log_prob <= 1e-5))

    # ---- numeric check vs. a pure-JAX reference (bf16-rounded MXU weights) ----
    # TODO(synk): the drawn action uses JAX Gumbel noise, so it is not bit-identical
    # to torch.distributions' RNG stream (distributionally equivalent).
    def ref_mlp(x, w1, b1, w2, b2, w3, b3):
        r = lambda w: w.astype(jnp.bfloat16).astype(jnp.float32)
        h = jax.nn.relu(x @ w1 + b1)
        h = jax.nn.relu(h @ r(w2) + b2)
        return h @ r(w3) + b3

    (aw1, ab1), (aw2, ab2), (aw3, ab3), (cw1, cb1), (cw2, cb2), (cw3, cb3) = params
    probs_ref = jax.nn.softmax(ref_mlp(x, aw1, ab1, aw2, ab2, aw3, ab3), axis=-1)
    logp_ref_all = jax.nn.log_softmax(probs_ref, axis=-1)   # Categorical(logits=probs)
    value_ref = ref_mlp(x, cw1, cb1, cw2, cb2, cw3, cb3)

    logp_ref = jnp.take_along_axis(logp_ref_all, action[:, None], axis=-1)[:, 0]
    assert bool(jnp.max(jnp.abs(value[:, 0] - value_ref[:, 0])) < 5e-2)
    assert bool(jnp.max(jnp.abs(log_prob - logp_ref)) < 5e-2)

    print("KERNEL_OK")
</pallas_src>

<mosaic_0001>
module attributes {stable_mosaic.version = 11 : i64} {
  func.func @actor_critic_kernel(%arg0: i32, %arg1: memref<256x8xf32, #tpu.memory_space<vmem>>, %arg2: memref<8x128xf32, #tpu.memory_space<vmem>>, %arg3: memref<128x128xbf16, #tpu.memory_space<vmem>>, %arg4: memref<128x128xbf16, #tpu.memory_space<vmem>>, %arg5: memref<256x8xf32, #tpu.memory_space<vmem>>) attributes {dimension_semantics = [#tpu.dimension_semantics<parallel>], iteration_bounds = array<i64: 2>, scalar_prefetch = 0 : i64, scratch_operands = 0 : i64, tpu.core_type = #tpu.core_type<tc>, window_params = [{transform_indices = @transform_0, window_bounds = array<i64: 256, 8>}, {pipeline_mode = #tpu.pipeline_mode<synchronous>, transform_indices = @transform_1, window_bounds = array<i64: 8, 128>}, {pipeline_mode = #tpu.pipeline_mode<synchronous>, transform_indices = @transform_2, window_bounds = array<i64: 128, 128>}, {pipeline_mode = #tpu.pipeline_mode<synchronous>, transform_indices = @transform_3, window_bounds = array<i64: 128, 128>}, {transform_indices = @transform_4, window_bounds = array<i64: 256, 8>}]} {
    %c0 = arith.constant 0 : index
    %c0_0 = arith.constant 0 : index
    %0 = vector.load %arg1[%c0, %c0_0] : memref<256x8xf32, #tpu.memory_space<vmem>>, vector<256x8xf32>
    %1 = vector.extract_strided_slice %0 {offsets = [0, 6], sizes = [256, 1], strides = [1, 1]} : vector<256x8xf32> to vector<256x1xf32>
    %2 = vector.extract_strided_slice %0 {offsets = [0, 7], sizes = [256, 1], strides = [1, 1]} : vector<256x8xf32> to vector<256x1xf32>
    %c0_1 = arith.constant 0 : index
    %c0_2 = arith.constant 0 : index
    %3 = vector.load %arg2[%c0_1, %c0_2] : memref<8x128xf32, #tpu.memory_space<vmem>>, vector<1x128xf32>
    %c1 = arith.constant 1 : index
    %c0_3 = arith.constant 0 : index
    %4 = vector.load %arg2[%c1, %c0_3] : memref<8x128xf32, #tpu.memory_space<vmem>>, vector<1x128xf32>
    %c2 = arith.constant 2 : index
    %c0_4 = arith.constant 0 : index
    %5 = vector.load %arg2[%c2, %c0_4] : memref<8x128xf32, #tpu.memory_space<vmem>>, vector<1x128xf32>
    %c3 = arith.constant 3 : index
    %c0_5 = arith.constant 0 : index
    %6 = vector.load %arg2[%c3, %c0_5] : memref<8x128xf32, #tpu.memory_space<vmem>>, vector<1x128xf32>
    %c4 = arith.constant 4 : index
    %c0_6 = arith.constant 0 : index
    %7 = vector.load %arg2[%c4, %c0_6] : memref<8x128xf32, #tpu.memory_space<vmem>>, vector<1x128xf32>
    %8 = vector.broadcast %1 : vector<256x1xf32> to vector<256x128xf32>
    %9 = vector.broadcast %3 : vector<1x128xf32> to vector<256x128xf32>
    %10 = arith.mulf %8, %9 : vector<256x128xf32>
    %11 = vector.broadcast %2 : vector<256x1xf32> to vector<256x128xf32>
    %12 = vector.broadcast %4 : vector<1x128xf32> to vector<256x128xf32>
    %13 = arith.mulf %11, %12 : vector<256x128xf32>
    %14 = arith.addf %10, %13 : vector<256x128xf32>
    %15 = vector.broadcast %5 : vector<1x128xf32> to vector<256x128xf32>
    %16 = arith.addf %14, %15 : vector<256x128xf32>
    %cst = arith.constant 0.000000e+00 : f32
    %17 = vector.broadcast %cst : f32 to vector<256x128xf32>
    %18 = arith.maximumf %16, %17 : vector<256x128xf32>
    %19 = arith.truncf %18 : vector<256x128xf32> to vector<256x128xbf16>
    %c0_7 = arith.constant 0 : index
    %c0_8 = arith.constant 0 : index
    %20 = vector.load %arg3[%c0_7, %c0_8] : memref<128x128xbf16, #tpu.memory_space<vmem>>, vector<128x128xbf16>
    %cst_9 = arith.constant dense<0.000000e+00> : vector<256x128xf32>
    %21 = tpu.matmul %19, %20, %cst_9 {dimension_numbers = #tpu.dot_dimension_numbers<[1], [0], [0], [1], [0, 0, 1, 1], [], []>} : vector<256x128xbf16>, vector<128x128xbf16>, vector<256x128xf32> -> vector<256x128xf32>
    %22 = vector.broadcast %6 : vector<1x128xf32> to vector<256x128xf32>
    %23 = arith.addf %21, %22 : vector<256x128xf32>
    %cst_10 = arith.constant 0.000000e+00 : f32
    %24 = vector.broadcast %cst_10 : f32 to vector<256x128xf32>
    %25 = arith.maximumf %23, %24 : vector<256x128xf32>
    %26 = arith.truncf %25 : vector<256x128xf32> to vector<256x128xbf16>
    %c0_11 = arith.constant 0 : index
    %c0_12 = arith.constant 0 : index
    %27 = vector.load %arg4[%c0_11, %c0_12] : memref<128x128xbf16, #tpu.memory_space<vmem>>, vector<128x128xbf16>
    %cst_13 = arith.constant dense<0.000000e+00> : vector<256x128xf32>
    %28 = tpu.matmul %26, %27, %cst_13 {dimension_numbers = #tpu.dot_dimension_numbers<[1], [0], [0], [1], [0, 0, 1, 1], [], []>} : vector<256x128xbf16>, vector<128x128xbf16>, vector<256x128xf32> -> vector<256x128xf32>
    %29 = vector.broadcast %7 : vector<1x128xf32> to vector<256x128xf32>
    %30 = arith.addf %28, %29 : vector<256x128xf32>
    %31 = vector.extract_strided_slice %30 {offsets = [0, 64], sizes = [256, 1], strides = [1, 1]} : vector<256x128xf32> to vector<256x1xf32>
    %32 = tpu.iota {dimensions = array<i32: 1>} : vector<256x128xi32>
    %c4_i32 = arith.constant 4 : i32
    %33 = vector.broadcast %c4_i32 : i32 to vector<256x128xi32>
    %34 = arith.cmpi slt, %32, %33 : vector<256x128xi32>
    %cst_14 = arith.constant -1.000000e+30 : f32
    %35 = vector.broadcast %cst_14 : f32 to vector<256x128xf32>
    %36 = arith.select %34, %30, %35 : vector<256x128xi1>, vector<256x128xf32>
    %cst_15 = arith.constant dense<0xFF800000> : vector<256xf32>
    %37 = vector.multi_reduction <maximumf>, %36, %cst_15 [1] : vector<256x128xf32> to vector<256xf32>
    %38 = vector.shape_cast %37 : vector<256xf32> to vector<256x1xf32>
    %39 = vector.broadcast %38 : vector<256x1xf32> to vector<256x128xf32>
    %40 = arith.subf %36, %39 : vector<256x128xf32>
    %41 = math.exp %40 : vector<256x128xf32>
    %cst_16 = arith.constant 0.000000e+00 : f32
    %42 = vector.broadcast %cst_16 : f32 to vector<256x128xf32>
    %43 = arith.select %34, %41, %42 : vector<256x128xi1>, vector<256x128xf32>
    %cst_17 = arith.constant dense<0.000000e+00> : vector<256xf32>
    %44 = vector.multi_reduction <add>, %43, %cst_17 [1] : vector<256x128xf32> to vector<256xf32>
    %45 = vector.shape_cast %44 : vector<256xf32> to vector<256x1xf32>
    %46 = vector.broadcast %45 : vector<256x1xf32> to vector<256x128xf32>
    %47 = arith.divf %43, %46 : vector<256x128xf32>
    %48 = math.exp %47 : vector<256x128xf32>
    %cst_18 = arith.constant 0.000000e+00 : f32
    %49 = vector.broadcast %cst_18 : f32 to vector<256x128xf32>
    %50 = arith.select %34, %48, %49 : vector<256x128xi1>, vector<256x128xf32>
    %cst_19 = arith.constant dense<0.000000e+00> : vector<256xf32>
    %51 = vector.multi_reduction <add>, %50, %cst_19 [1] : vector<256x128xf32> to vector<256xf32>
    %52 = vector.shape_cast %51 : vector<256xf32> to vector<256x1xf32>
    %53 = math.log %52 : vector<256x1xf32>
    %54 = tpu.iota {dimensions = array<i32: 1>} : vector<256x8xi32>
    %c4_i32_20 = arith.constant 4 : i32
    %55 = vector.broadcast %c4_i32_20 : i32 to vector<256x8xi32>
    %56 = arith.cmpi slt, %54, %55 : vector<256x8xi32>
    %57 = vector.extract_strided_slice %47 {offsets = [0, 0], sizes = [256, 8], strides = [1, 1]} : vector<256x128xf32> to vector<256x8xf32>
    %58 = arith.addf %57, %0 : vector<256x8xf32>
    %cst_21 = arith.constant -1.000000e+30 : f32
    %59 = vector.broadcast %cst_21 : f32 to vector<256x8xf32>
    %60 = arith.select %56, %58, %59 : vector<256x8xi1>, vector<256x8xf32>
    %cst_22 = arith.constant dense<0xFF800000> : vector<256xf32>
    %61 = vector.multi_reduction <maximumf>, %60, %cst_22 [1] : vector<256x8xf32> to vector<256xf32>
    %62 = vector.shape_cast %61 : vector<256xf32> to vector<256x1xf32>
    %63 = vector.broadcast %62 : vector<256x1xf32> to vector<256x8xf32>
    %64 = arith.cmpf oeq, %60, %63 : vector<256x8xf32>
    %65 = arith.andi %64, %56 : vector<256x8xi1>
    %66 = arith.sitofp %54 : vector<256x8xi32> to vector<256x8xf32>
    %cst_23 = arith.constant 8.000000e+00 : f32
    %67 = vector.broadcast %cst_23 : f32 to vector<256x8xf32>
    %68 = arith.select %65, %66, %67 : vector<256x8xi1>, vector<256x8xf32>
    %cst_24 = arith.constant dense<0x7F800000> : vector<256xf32>
    %69 = vector.multi_reduction <minimumf>, %68, %cst_24 [1] : vector<256x8xf32> to vector<256xf32>
    %70 = vector.shape_cast %69 : vector<256xf32> to vector<256x1xf32>
    %cst_25 = arith.constant 3.000000e+00 : f32
    %71 = vector.broadcast %cst_25 : f32 to vector<256x1xf32>
    %72 = arith.minimumf %70, %71 : vector<256x1xf32>
    %73 = arith.fptosi %72 : vector<256x1xf32> to vector<256x1xi32>
    %74 = vector.broadcast %73 : vector<256x1xi32> to vector<256x8xi32>
    %75 = arith.cmpi eq, %54, %74 : vector<256x8xi32>
    %76 = vector.extract_strided_slice %47 {offsets = [0, 0], sizes = [256, 8], strides = [1, 1]} : vector<256x128xf32> to vector<256x8xf32>
    %cst_26 = arith.constant 0.000000e+00 : f32
    %77 = vector.broadcast %cst_26 : f32 to vector<256x8xf32>
    %78 = arith.select %75, %76, %77 : vector<256x8xi1>, vector<256x8xf32>
    %cst_27 = arith.constant dense<0.000000e+00> : vector<256xf32>
    %79 = vector.multi_reduction <add>, %78, %cst_27 [1] : vector<256x8xf32> to vector<256xf32>
    %80 = vector.shape_cast %79 : vector<256xf32> to vector<256x1xf32>
    %81 = arith.subf %80, %53 : vector<256x1xf32>
    %c0_i32 = arith.constant 0 : i32
    %82 = vector.broadcast %c0_i32 : i32 to vector<256x8xi32>
    %83 = arith.cmpi eq, %54, %82 : vector<256x8xi32>
    %c1_i32 = arith.constant 1 : i32
    %84 = vector.broadcast %c1_i32 : i32 to vector<256x8xi32>
    %85 = arith.cmpi eq, %54, %84 : vector<256x8xi32>
    %c2_i32 = arith.constant 2 : i32
    %86 = vector.broadcast %c2_i32 : i32 to vector<256x8xi32>
    %87 = arith.cmpi eq, %54, %86 : vector<256x8xi32>
    %cst_28 = arith.constant 0.000000e+00 : f32
    %88 = vector.shape_cast %72 : vector<256x1xf32> to vector<256x1xf32>
    %89 = vector.broadcast %88 : vector<256x1xf32> to vector<256x8xf32>
    %90 = vector.broadcast %cst_28 : f32 to vector<256x8xf32>
    %91 = arith.select %87, %89, %90 : vector<256x8xi1>, vector<256x8xf32>
    %92 = vector.shape_cast %81 : vector<256x1xf32> to vector<256x1xf32>
    %93 = vector.broadcast %92 : vector<256x1xf32> to vector<256x8xf32>
    %94 = arith.select %85, %93, %91 : vector<256x8xi1>, vector<256x8xf32>
    %95 = vector.shape_cast %31 : vector<256x1xf32> to vector<256x1xf32>
    %96 = vector.broadcast %95 : vector<256x1xf32> to vector<256x8xf32>
    %97 = arith.select %83, %96, %94 : vector<256x8xi1>, vector<256x8xf32>
    %c0_29 = arith.constant 0 : index
    %c0_30 = arith.constant 0 : index
    %98 = vector.load %arg5[%c0_29, %c0_30] : memref<256x8xf32, #tpu.memory_space<vmem>>, vector<256x8xf32>
    tpu.vector_store %arg5[%c0_29, %c0_30], %97 {strides = array<i32>} : memref<256x8xf32, #tpu.memory_space<vmem>>, vector<256x8xf32>,
    return
  }
  func.func @transform_0(%arg0: i32) -> (i32, i32) {
    %c0_i32 = arith.constant 0 : i32
    %c0_i32_0 = arith.constant 0 : i32
    return %arg0, %c0_i32 : i32, i32
  }
  func.func @transform_1(%arg0: i32) -> (i32, i32) {
    %c0_i32 = arith.constant 0 : i32
    %c0_i32_0 = arith.constant 0 : i32
    %c0_i32_1 = arith.constant 0 : i32
    return %c0_i32, %c0_i32_0 : i32, i32
  }
  func.func @transform_2(%arg0: i32) -> (i32, i32) {
    %c0_i32 = arith.constant 0 : i32
    %c0_i32_0 = arith.constant 0 : i32
    %c0_i32_1 = arith.constant 0 : i32
    return %c0_i32, %c0_i32_0 : i32, i32
  }
  func.func @transform_3(%arg0: i32) -> (i32, i32) {
    %c0_i32 = arith.constant 0 : i32
    %c0_i32_0 = arith.constant 0 : i32
    %c0_i32_1 = arith.constant 0 : i32
    return %c0_i32, %c0_i32_0 : i32, i32
  }
  func.func @transform_4(%arg0: i32) -> (i32, i32) {
    %c0_i32 = arith.constant 0 : i32
    %c0_i32_0 = arith.constant 0 : i32
    return %arg0, %c0_i32 : i32, i32
  }
}

</mosaic_0001>

<llo_original>
// kernel: tpu_custom_call.1
$region0: #{tpu_custom_call.1}
  #allocation0 [shape = 'u32[]', space=smem, size = 0x4, offset = 0x4, fixed_abs, tag = 'smem constant byte address 0x4 - core index']
  #allocation1 [shape = 'u32[144,128]{1,0:T(1,128)}', space=vmem, size = 0x12000, scoped, tag = 'internal scratch']
  %s0 = inlined_call_operand.vmem [shape: f32[512,8], index: 0, kind: input, shape index: {}]
  %s1 = inlined_call_operand.vmem [shape: f32[8,128], index: 1, kind: input, shape index: {}]
  %s2 = inlined_call_operand.vmem [shape: bf16[128,128], index: 2, kind: input, shape index: {}]
  %s3 = inlined_call_operand.vmem [shape: bf16[128,128], index: 3, kind: input, shape index: {}]
  %s4 = inlined_call_operand.vmem [shape: f32[512,8], index: 4, kind: output, shape index: {}]
  %s5 = sld [smem:[#allocation0]]
  $region49: #{tpu_custom_call.1} parent=0
    _
  %s7 = ssub.s32 1, %s5
  %s8 = scalar_select 0, %s7, %s5
  loop: start=0, step=1, limit=4
  $region2: #{tpu_custom_call.1} parent=0 // loop_pre_header
    _
  $region3: #{tpu_custom_call.1} parent=0 // loop_header
    %s10 = sphi 0, %s14
    %p11 = scmp.ge.s32.totalorder %s10, 4
    %s20 = sphi 0, %s22
    %s23 = sphi 0, %s20
    %s24 = sphi 0, %s23
    %s40 = sphi 0, %s24
    %s44 = sphi 0, %s44
    %s46 = sphi 0, %s44
    %s47 = sphi 0, %s46
    %s61 = sphi 0, %s47
    %s65 = sphi 0, %s65
    %s67 = sphi 0, %s65
    %s68 = sphi 0, %s67
    %s82 = sphi 0, %s68
    %s86 = sphi 0, %s86
    %s88 = sphi 0, %s86
    %s89 = sphi 0, %s88
    %s103 = sphi 0, %s89
    %s109 = sphi 0, %s111
    %s112 = sphi 0, %s109
    %s113 = sphi 0, %s112
    %s129 = sphi 0, %s113
  $region4: #{tpu_custom_call.1} parent=0 // loop_header_branch
    %13 = sbr.rel (%p11) target = $region8
  $region5: #{tpu_custom_call.1} parent=0 // loop_body
    %s15 = ssub.s32 %s10, 1
    %s16 = ssub.s32 %s10, 2
    %s17 = sadd.s32 %s10, 1
    %s18 = ssub.s32 %s10, %s17
    %p19 = scmp.eq.s32.totalorder %s18, 0
    %s21 = sadd.s32 %s20, 1
    %s22 = scalar_select %p19, %s20, %s21
    %p25 = pneg %p19
    %p26 = scmp.eq.s32.totalorder %s10, 1
    %p27 = por %p25, %p26
    %p28 = scmp.ne.s32.totalorder %s20, %s23
    %p29 = scmp.eq.s32.totalorder %s10, 0
    %p30 = por %p28, %p29
    %p31 = scmp.ne.s32.totalorder %s20, %s23
    %p32 = scmp.eq.s32.totalorder %s15, 1
    %p33 = por %p31, %p32
    %p34 = scmp.ne.s32.totalorder %s23, %s24
    %p35 = scmp.eq.s32.totalorder %s15, 0
    %p36 = por %p34, %p35
    %p37 = scmp.ne.s32.totalorder %s23, %s24
    %p38 = scmp.eq.s32.totalorder %s16, 1
    %p39 = por %p37, %p38
    %p41 = scmp.ne.s32.totalorder %s24, %s40
    %p42 = scmp.eq.s32.totalorder %s16, 0
    %p43 = por %p41, %p42
    %s45 = sadd.s32 %s44, 1
    %p48 = scmp.eq.s32.totalorder %s10, 1
    %p49 = scmp.ne.s32.totalorder %s44, %s46
    %p50 = scmp.eq.s32.totalorder %s10, 0
    %p51 = por %p49, %p50
    %p52 = scmp.ne.s32.totalorder %s44, %s46
    %p53 = scmp.eq.s32.totalorder %s15, 1
    %p54 = por %p52, %p53
    %p55 = scmp.ne.s32.totalorder %s46, %s47
    %p56 = scmp.eq.s32.totalorder %s15, 0
    %p57 = por %p55, %p56
    %p58 = scmp.ne.s32.totalorder %s46, %s47
    %p59 = scmp.eq.s32.totalorder %s16, 1
    %p60 = por %p58, %p59
    %p62 = scmp.ne.s32.totalorder %s47, %s61
    %p63 = scmp.eq.s32.totalorder %s16, 0
    %p64 = por %p62, %p63
    %s66 = sadd.s32 %s65, 1
    %p69 = scmp.eq.s32.totalorder %s10, 1
    %p70 = scmp.ne.s32.totalorder %s65, %s67
    %p71 = scmp.eq.s32.totalorder %s10, 0
    %p72 = por %p70, %p71
    %p73 = scmp.ne.s32.totalorder %s65, %s67
    %p74 = scmp.eq.s32.totalorder %s15, 1
    %p75 = por %p73, %p74
    %p76 = scmp.ne.s32.totalorder %s67, %s68
    %p77 = scmp.eq.s32.totalorder %s15, 0
    %p78 = por %p76, %p77
    %p79 = scmp.ne.s32.totalorder %s67, %s68
    %p80 = scmp.eq.s32.totalorder %s16, 1
    %p81 = por %p79, %p80
    %p83 = scmp.ne.s32.totalorder %s68, %s82
    %p84 = scmp.eq.s32.totalorder %s16, 0
    %p85 = por %p83, %p84
    %s87 = sadd.s32 %s86, 1
    %p90 = scmp.eq.s32.totalorder %s10, 1
    %p91 = scmp.ne.s32.totalorder %s86, %s88
    %p92 = scmp.eq.s32.totalorder %s10, 0
    %p93 = por %p91, %p92
    %p94 = scmp.ne.s32.totalorder %s86, %s88
    %p95 = scmp.eq.s32.totalorder %s15, 1
    %p96 = por %p94, %p95
    %p97 = scmp.ne.s32.totalorder %s88, %s89
    %p98 = scmp.eq.s32.totalorder %s15, 0
    %p99 = por %p97, %p98
    %p100 = scmp.ne.s32.totalorder %s88, %s89
    %p101 = scmp.eq.s32.totalorder %s16, 1
    %p102 = por %p100, %p101
    %p104 = scmp.ne.s32.totalorder %s89, %s103
    %p105 = scmp.eq.s32.totalorder %s16, 0
    %p106 = por %p104, %p105
    %s107 = ssub.s32 %s10, %s17
    %p108 = scmp.eq.s32.totalorder %s107, 0
    %s110 = sadd.s32 %s109, 1
    %s111 = scalar_select %p108, %s109, %s110
    %p114 = pneg %p108
    %p115 = scmp.eq.s32.totalorder %s10, 1
    %p116 = por %p114, %p115
    %p117 = scmp.ne.s32.totalorder %s109, %s112
    %p118 = scmp.eq.s32.totalorder %s10, 0
    %p119 = por %p117, %p118
    %p120 = scmp.ne.s32.totalorder %s109, %s112
    %p121 = scmp.eq.s32.totalorder %s15, 1
    %p122 = por %p120, %p121
    %p123 = scmp.ne.s32.totalorder %s112, %s113
    %p124 = scmp.eq.s32.totalorder %s15, 0
    %p125 = por %p123, %p124
    %p126 = scmp.ne.s32.totalorder %s112, %s113
    %p127 = scmp.eq.s32.totalorder %s16, 1
    %p128 = por %p126, %p127
    %p130 = scmp.ne.s32.totalorder %s113, %s129
    %p131 = scmp.eq.s32.totalorder %s16, 0
    %p132 = por %p130, %p131
    %p133 = scmp.le.s32.totalorder 1, %s10
    %p134 = scmp.lt.s32.totalorder %s10, 3
    %p135 = pnand %p133, %p134
    %p136 = pneg %p135
    // Predicated region
    $region9: #{tpu_custom_call.1} parent=5 // pred_check
      _
    $region10: #{tpu_custom_call.1} parent=5 // pred_check_branch
      %138 = sbr.rel (%p135) target = $region12
    $region11: #{tpu_custom_call.1} parent=5 // pred_region
      %s139 = ssub.s32 %s10, 1
      // Predicated region
      $region13: #{tpu_custom_call.1} parent=11 // pred_check
        %p140 = pneg %p57
      $region14: #{tpu_custom_call.1} parent=11 // pred_check_branch
        %142 = sbr.rel (%p140) target = $region16
      $region15: #{tpu_custom_call.1} parent=11 // pred_region
        _
      $region16: #{tpu_custom_call.1} parent=11 // pred_fallthru
        _
      // Predicated region
      $region17: #{tpu_custom_call.1} parent=11 // pred_check
        %p143 = pneg %p78
      $region18: #{tpu_custom_call.1} parent=11 // pred_check_branch
        %145 = sbr.rel (%p143) target = $region20
      $region19: #{tpu_custom_call.1} parent=11 // pred_region
        _
      $region20: #{tpu_custom_call.1} parent=11 // pred_fallthru
        _
      // Predicated region
      $region21: #{tpu_custom_call.1} parent=11 // pred_check
        %p146 = pneg %p99
      $region22: #{tpu_custom_call.1} parent=11 // pred_check_branch
        %148 = sbr.rel (%p146) target = $region24
      $region23: #{tpu_custom_call.1} parent=11 // pred_region
        _
      $region24: #{tpu_custom_call.1} parent=11 // pred_fallthru
        _
    $region12: #{tpu_custom_call.1} parent=5 // pred_fallthru
      _
    %p149 = scmp.lt.s32.totalorder %s10, 2
    // Predicated region
    $region25: #{tpu_custom_call.1} parent=5 // pred_check
      %p150 = pneg %p149
    $region26: #{tpu_custom_call.1} parent=5 // pred_check_branch
      %152 = sbr.rel (%p150) target = $region28
    $region27: #{tpu_custom_call.1} parent=5 // pred_region
      // Predicated region
      $region29: #{tpu_custom_call.1} parent=27 // pred_check
        %p153 = pneg %p30
      $region30: #{tpu_custom_call.1} parent=27 // pred_check_branch
        %155 = sbr.rel (%p153) target = $region32
      $region31: #{tpu_custom_call.1} parent=27 // pred_region
        %s156 = smul.u32 32, %s10
        %p157 = scmp.lt.s32.totalorder %s156, 63
        %s158 = scalar_select %p157, %s156, 63
        %s159 = smul.addr %s158, 8
        %s160 = scalar_lea.vmem %s0, %s159
        %s161 = smul.u32 32, %s10
      $region32: #{tpu_custom_call.1} parent=27 // pred_fallthru
        _
    $region28: #{tpu_custom_call.1} parent=5 // pred_fallthru
      _
    %p162 = scmp.le.s32.totalorder 1, %s10
    %p163 = scmp.lt.s32.totalorder %s10, 3
    %p164 = pnand %p162, %p163
    %p165 = pneg %p164
    // Predicated region
    $region33: #{tpu_custom_call.1} parent=5 // pred_check
      _
    $region34: #{tpu_custom_call.1} parent=5 // pred_check_branch
      %167 = sbr.rel (%p164) target = $region36
    $region35: #{tpu_custom_call.1} parent=5 // pred_region
      %s168 = ssub.s32 %s10, 1
      %s169 = smul.u32 32, %s15
      %p170 = scmp.lt.s32.totalorder %s169, 63
      %s171 = scalar_select %p170, %s169, 63
      %s172 = smul.addr %s171, 8
      %s173 = scalar_lea.vmem %s0, %s172
      %p174 = pneg %p36
      %p175 = pneg %p33
      %p176 = pneg %p57
      %p177 = pneg %p54
      %p178 = pneg %p78
      %p179 = pneg %p75
      %p180 = pneg %p99
      %p181 = pneg %p96
      %p182 = pneg %p125
      %p183 = pneg %p122
      %s184 = smul.u32 32, %s15
      %p185 = scmp.lt.s32.totalorder %s184, 63
      %s186 = scalar_select %p185, %s184, 63
      %s187 = smul.addr %s186, 8
      %s188 = scalar_lea.vmem %s4, %s187
      %s189 = smul.u32 32, %s15
      %p190 = scmp.lt.s32.totalorder %s189, 63
      %s191 = scalar_select %p190, %s189, 63
      %s192 = smul.addr %s191, 8
      %s193 = scalar_lea.vmem %s0, %s192
      %s194 = smul.u32 32, %s15
      %s195 = smul.u32 32, %s15
      %p196 = scmp.lt.s32.totalorder %s195, 63
      %s197 = scalar_select %p196, %s195, 63
      %s198 = smul.addr %s197, 8
      %s199 = scalar_lea.vmem %s4, %s198
      %s200 = smul.u32 32, %s15
      %v202 = vld [vmem:[%s193] sm:$0xff]
      %v203 = vld [vmem:[%s193 + $0x8] sm:$0xff]
      %v204 = vld [vmem:[%s193 + $0x10] sm:$0xff]
      %v205 = vld [vmem:[%s193 + $0x18] sm:$0xff]
      %v206 = vld [vmem:[%s193 + $0x20] sm:$0xff]
      %v207 = vld [vmem:[%s193 + $0x28] sm:$0xff]
      %v208 = vld [vmem:[%s193 + $0x30] sm:$0xff]
      %v209 = vld [vmem:[%s193 + $0x38] sm:$0xff]
      %v210 = vld [vmem:[%s193 + $0x40] sm:$0xff]
      %v211 = vld [vmem:[%s193 + $0x48] sm:$0xff]
      %v212 = vld [vmem:[%s193 + $0x50] sm:$0xff]
      %v213 = vld [vmem:[%s193 + $0x58] sm:$0xff]
      %v214 = vld [vmem:[%s193 + $0x60] sm:$0xff]
      %v215 = vld [vmem:[%s193 + $0x68] sm:$0xff]
      %v216 = vld [vmem:[%s193 + $0x70] sm:$0xff]
      %v217 = vld [vmem:[%s193 + $0x78] sm:$0xff]
      %v218 = vld [vmem:[%s193 + $0x80] sm:$0xff]
      %v219 = vld [vmem:[%s193 + $0x88] sm:$0xff]
      %v220 = vld [vmem:[%s193 + $0x90] sm:$0xff]
      %v221 = vld [vmem:[%s193 + $0x98] sm:$0xff]
      %v222 = vld [vmem:[%s193 + $0xa0] sm:$0xff]
      %v223 = vld [vmem:[%s193 + $0xa8] sm:$0xff]
      %v224 = vld [vmem:[%s193 + $0xb0] sm:$0xff]
      %v225 = vld [vmem:[%s193 + $0xb8] sm:$0xff]
      %v226 = vld [vmem:[%s193 + $0xc0] sm:$0xff]
      %v227 = vld [vmem:[%s193 + $0xc8] sm:$0xff]
      %v228 = vld [vmem:[%s193 + $0xd0] sm:$0xff]
      %v229 = vld [vmem:[%s193 + $0xd8] sm:$0xff]
      %v230 = vld [vmem:[%s193 + $0xe0] sm:$0xff]
      %v231 = vld [vmem:[%s193 + $0xe8] sm:$0xff]
      %v232 = vld [vmem:[%s193 + $0xf0] sm:$0xff]
      %v233 = vld [vmem:[%s193 + $0xf8] sm:$0xff]
      %v234 = vld [vmem:[%s1] sm:$0x1]
      %v235 = vld [vmem:[%s1 + $0x1] sm:$0x1]
      %v236 = vld [vmem:[%s1 + $0x2] sm:$0x1]
      %v237 = vld [vmem:[%s1 + $0x3] sm:$0x1]
      %v238 = vld [vmem:[%s1 + $0x4] sm:$0x1]
      %240 = vset.pattern.permute.xlu0 6
      %241 = vperm.xlu0 %240, %v202
      %v242 = vpop.permute.xlu0 %241
      %245 = vset.pattern.permute.xlu0 6
      %246 = vperm.xlu0 %245, %v203
      %v247 = vpop.permute.xlu0 %246
      %250 = vset.pattern.permute.xlu0 6
      %251 = vperm.xlu0 %250, %v204
      %v252 = vpop.permute.xlu0 %251
      %255 = vset.pattern.permute.xlu0 6
      %256 = vperm.xlu0 %255, %v205
      %v257 = vpop.permute.xlu0 %256
      %260 = vset.pattern.permute.xlu0 6
      %261 = vperm.xlu0 %260, %v206
      %v262 = vpop.permute.xlu0 %261
      %265 = vset.pattern.permute.xlu0 6
      %266 = vperm.xlu0 %265, %v207
      %v267 = vpop.permute.xlu0 %266
      %270 = vset.pattern.permute.xlu0 6
      %271 = vperm.xlu0 %270, %v208
      %v272 = vpop.permute.xlu0 %271
      %275 = vset.pattern.permute.xlu0 6
      %276 = vperm.xlu0 %275, %v209
      %v277 = vpop.permute.xlu0 %276
      %280 = vset.pattern.permute.xlu0 6
      %281 = vperm.xlu0 %280, %v210
      %v282 = vpop.permute.xlu0 %281
      %285 = vset.pattern.permute.xlu0 6
      %286 = vperm.xlu0 %285, %v211
      %v287 = vpop.permute.xlu0 %286
      %290 = vset.pattern.permute.xlu0 6
      %291 = vperm.xlu0 %290, %v212
      %v292 = vpop.permute.xlu0 %291
      %295 = vset.pattern.permute.xlu0 6
      %296 = vperm.xlu0 %295, %v213
      %v297 = vpop.permute.xlu0 %296
      %300 = vset.pattern.permute.xlu0 6
      %301 = vperm.xlu0 %300, %v214
      %v302 = vpop.permute.xlu0 %301
      %305 = vset.pattern.permute.xlu0 6
      %306 = vperm.xlu0 %305, %v215
      %v307 = vpop.permute.xlu0 %306
      %310 = vset.pattern.permute.xlu0 6
      %311 = vperm.xlu0 %310, %v216
      %v312 = vpop.permute.xlu0 %311
      %315 = vset.pattern.permute.xlu0 6
      %316 = vperm.xlu0 %315, %v217
      %v317 = vpop.permute.xlu0 %316
      %320 = vset.pattern.permute.xlu0 6
      %321 = vperm.xlu0 %320, %v218
      %v322 = vpop.permute.xlu0 %321
      %325 = vset.pattern.permute.xlu0 6
      %326 = vperm.xlu0 %325, %v219
      %v327 = vpop.permute.xlu0 %326
      %330 = vset.pattern.permute.xlu0 6
      %331 = vperm.xlu0 %330, %v220
      %v332 = vpop.permute.xlu0 %331
      %335 = vset.pattern.permute.xlu0 6
      %336 = vperm.xlu0 %335, %v221
      %v337 = vpop.permute.xlu0 %336
      %340 = vset.pattern.permute.xlu0 6
      %341 = vperm.xlu0 %340, %v222
      %v342 = vpop.permute.xlu0 %341
      %345 = vset.pattern.permute.xlu0 6
      %346 = vperm.xlu0 %345, %v223
      %v347 = vpop.permute.xlu0 %346
      %350 = vset.pattern.permute.xlu0 6
      %351 = vperm.xlu0 %350, %v224
      %v352 = vpop.permute.xlu0 %351
      %355 = vset.pattern.permute.xlu0 6
      %356 = vperm.xlu0 %355, %v225
      %v357 = vpop.permute.xlu0 %356
      %360 = vset.pattern.permute.xlu0 6
      %361 = vperm.xlu0 %360, %v226
      %v362 = vpop.permute.xlu0 %361
      %365 = vset.pattern.permute.xlu0 6
      %366 = vperm.xlu0 %365, %v227
      %v367 = vpop.permute.xlu0 %366
      %370 = vset.pattern.permute.xlu0 6
      %371 = vperm.xlu0 %370, %v228
      %v372 = vpop.permute.xlu0 %371
      %375 = vset.pattern.permute.xlu0 6
      %376 = vperm.xlu0 %375, %v229
      %v377 = vpop.permute.xlu0 %376
      %380 = vset.pattern.permute.xlu0 6
      %381 = vperm.xlu0 %380, %v230
      %v382 = vpop.permute.xlu0 %381
      %385 = vset.pattern.permute.xlu0 6
      %386 = vperm.xlu0 %385, %v231
      %v387 = vpop.permute.xlu0 %386
      %390 = vset.pattern.permute.xlu0 6
      %391 = vperm.xlu0 %390, %v232
      %v392 = vpop.permute.xlu0 %391
      %395 = vset.pattern.permute.xlu0 6
      %396 = vperm.xlu0 %395, %v233
      %v397 = vpop.permute.xlu0 %396
      %v399 = vlaneseq
      %v400 = vshrl.u32 %v399, 7
      %v401 = vsub.s32 0, %v400
      %v402 = vrot.slane %v234, %v401
      %v403 = vmul.f32 %v242, %v402
      %v404 = vmul.f32 %v247, %v402
      %v405 = vmul.f32 %v252, %v402
      %v406 = vmul.f32 %v257, %v402
      %v407 = vmul.f32 %v262, %v402
      %v408 = vmul.f32 %v267, %v402
      %v409 = vmul.f32 %v272, %v402
      %v410 = vmul.f32 %v277, %v402
      %v411 = vmul.f32 %v282, %v402
      %v412 = vmul.f32 %v287, %v402
      %v413 = vmul.f32 %v292, %v402
      %v414 = vmul.f32 %v297, %v402
      %v415 = vmul.f32 %v302, %v402
      %v416 = vmul.f32 %v307, %v402
      %v417 = vmul.f32 %v312, %v402
      %v418 = vmul.f32 %v317, %v402
      %v419 = vmul.f32 %v322, %v402
      %v420 = vmul.f32 %v327, %v402
      %v421 = vmul.f32 %v332, %v402
      %v422 = vmul.f32 %v337, %v402
      %v423 = vmul.f32 %v342, %v402
      %v424 = vmul.f32 %v347, %v402
      %v425 = vmul.f32 %v352, %v402
      %v426 = vmul.f32 %v357, %v402
      %v427 = vmul.f32 %v362, %v402
      %v428 = vmul.f32 %v367, %v402
      %v429 = vmul.f32 %v372, %v402
      %v430 = vmul.f32 %v377, %v402
      %v431 = vmul.f32 %v382, %v402
      %v432 = vmul.f32 %v387, %v402
      %v433 = vmul.f32 %v392, %v402
      %v434 = vmul.f32 %v397, %v402
      %435 = vset.pattern.permute.xlu0 7
      %436 = vperm.xlu0 %435, %v202
      %v437 = vpop.permute.xlu0 %436
      %439 = vset.pattern.permute.xlu0 7
      %440 = vperm.xlu0 %439, %v203
      %v441 = vpop.permute.xlu0 %440
      %443 = vset.pattern.permute.xlu0 7
      %444 = vperm.xlu0 %443, %v204
      %v445 = vpop.permute.xlu0 %444
      %447 = vset.pattern.permute.xlu0 7
      %448 = vperm.xlu0 %447, %v205
      %v449 = vpop.permute.xlu0 %448
      %451 = vset.pattern.permute.xlu0 7
      %452 = vperm.xlu0 %451, %v206
      %v453 = vpop.permute.xlu0 %452
      %455 = vset.pattern.permute.xlu0 7
      %456 = vperm.xlu0 %455, %v207
      %v457 = vpop.permute.xlu0 %456
      %459 = vset.pattern.permute.xlu0 7
      %460 = vperm.xlu0 %459, %v208
      %v461 = vpop.permute.xlu0 %460
      %463 = vset.pattern.permute.xlu0 7
      %464 = vperm.xlu0 %463, %v209
      %v465 = vpop.permute.xlu0 %464
      %467 = vset.pattern.permute.xlu0 7
      %468 = vperm.xlu0 %467, %v210
      %v469 = vpop.permute.xlu0 %468
      %471 = vset.pattern.permute.xlu0 7
      %472 = vperm.xlu0 %471, %v211
      %v473 = vpop.permute.xlu0 %472
      %475 = vset.pattern.permute.xlu0 7
      %476 = vperm.xlu0 %475, %v212
      %v477 = vpop.permute.xlu0 %476
      %479 = vset.pattern.permute.xlu0 7
      %480 = vperm.xlu0 %479, %v213
      %v481 = vpop.permute.xlu0 %480
      %483 = vset.pattern.permute.xlu0 7
      %484 = vperm.xlu0 %483, %v214
      %v485 = vpop.permute.xlu0 %484
      %487 = vset.pattern.permute.xlu0 7
      %488 = vperm.xlu0 %487, %v215
      %v489 = vpop.permute.xlu0 %488
      %491 = vset.pattern.permute.xlu0 7
      %492 = vperm.xlu0 %491, %v216
      %v493 = vpop.permute.xlu0 %492
      %495 = vset.pattern.permute.xlu0 7
      %496 = vperm.xlu0 %495, %v217
      %v497 = vpop.permute.xlu0 %496
      %499 = vset.pattern.permute.xlu0 7
      %500 = vperm.xlu0 %499, %v218
      %v501 = vpop.permute.xlu0 %500
      %503 = vset.pattern.permute.xlu0 7
      %504 = vperm.xlu0 %503, %v219
      %v505 = vpop.permute.xlu0 %504
      %507 = vset.pattern.permute.xlu0 7
      %508 = vperm.xlu0 %507, %v220
      %v509 = vpop.permute.xlu0 %508
      %511 = vset.pattern.permute.xlu0 7
      %512 = vperm.xlu0 %511, %v221
      %v513 = vpop.permute.xlu0 %512
      %515 = vset.pattern.permute.xlu0 7
      %516 = vperm.xlu0 %515, %v222
      %v517 = vpop.permute.xlu0 %516
      %519 = vset.pattern.permute.xlu0 7
      %520 = vperm.xlu0 %519, %v223
      %v521 = vpop.permute.xlu0 %520
      %523 = vset.pattern.permute.xlu0 7
      %524 = vperm.xlu0 %523, %v224
      %v525 = vpop.permute.xlu0 %524
      %527 = vset.pattern.permute.xlu0 7
      %528 = vperm.xlu0 %527, %v225
      %v529 = vpop.permute.xlu0 %528
      %531 = vset.pattern.permute.xlu0 7
      %532 = vperm.xlu0 %531, %v226
      %v533 = vpop.permute.xlu0 %532
      %535 = vset.pattern.permute.xlu0 7
      %536 = vperm.xlu0 %535, %v227
      %v537 = vpop.permute.xlu0 %536
      %539 = vset.pattern.permute.xlu0 7
      %540 = vperm.xlu0 %539, %v228
      %v541 = vpop.permute.xlu0 %540
      %543 = vset.pattern.permute.xlu0 7
      %544 = vperm.xlu0 %543, %v229
      %v545 = vpop.permute.xlu0 %544
      %547 = vset.pattern.permute.xlu0 7
      %548 = vperm.xlu0 %547, %v230
      %v549 = vpop.permute.xlu0 %548
      %551 = vset.pattern.permute.xlu0 7
      %552 = vperm.xlu0 %551, %v231
      %v553 = vpop.permute.xlu0 %552
      %555 = vset.pattern.permute.xlu0 7
      %556 = vperm.xlu0 %555, %v232
      %v557 = vpop.permute.xlu0 %556
      %559 = vset.pattern.permute.xlu0 7
      %560 = vperm.xlu0 %559, %v233
      %v561 = vpop.permute.xlu0 %560
      %v563 = vlaneseq
      %v564 = vshrl.u32 %v563, 7
      %v565 = vsub.s32 0, %v564
      %v566 = vrot.slane %v235, %v565
      %v567 = vmul.f32 %v437, %v566
      %v568 = vmul.f32 %v441, %v566
      %v569 = vmul.f32 %v445, %v566
      %v570 = vmul.f32 %v449, %v566
      %v571 = vmul.f32 %v453, %v566
      %v572 = vmul.f32 %v457, %v566
      %v573 = vmul.f32 %v461, %v566
      %v574 = vmul.f32 %v465, %v566
      %v575 = vmul.f32 %v469, %v566
      %v576 = vmul.f32 %v473, %v566
      %v577 = vmul.f32 %v477, %v566
      %v578 = vmul.f32 %v481, %v566
      %v579 = vmul.f32 %v485, %v566
      %v580 = vmul.f32 %v489, %v566
      %v581 = vmul.f32 %v493, %v566
      %v582 = vmul.f32 %v497, %v566
      %v583 = vmul.f32 %v501, %v566
      %v584 = vmul.f32 %v505, %v566
      %v585 = vmul.f32 %v509, %v566
      %v586 = vmul.f32 %v513, %v566
      %v587 = vmul.f32 %v517, %v566
      %v588 = vmul.f32 %v521, %v566
      %v589 = vmul.f32 %v525, %v566
      %v590 = vmul.f32 %v529, %v566
      %v591 = vmul.f32 %v533, %v566
      %v592 = vmul.f32 %v537, %v566
      %v593 = vmul.f32 %v541, %v566
      %v594 = vmul.f32 %v545, %v566
      %v595 = vmul.f32 %v549, %v566
      %v596 = vmul.f32 %v553, %v566
      %v597 = vmul.f32 %v557, %v566
      %v598 = vmul.f32 %v561, %v566
      %v599 = vadd.f32 %v403, %v567
      %v600 = vadd.f32 %v404, %v568
      %v601 = vadd.f32 %v405, %v569
      %v602 = vadd.f32 %v406, %v570
      %v603 = vadd.f32 %v407, %v571
      %v604 = vadd.f32 %v408, %v572
      %v605 = vadd.f32 %v409, %v573
      %v606 = vadd.f32 %v410, %v574
      %v607 = vadd.f32 %v411, %v575
      %v608 = vadd.f32 %v412, %v576
      %v609 = vadd.f32 %v413, %v577
      %v610 = vadd.f32 %v414, %v578
      %v611 = vadd.f32 %v415, %v579
      %v612 = vadd.f32 %v416, %v580
      %v613 = vadd.f32 %v417, %v581
      %v614 = vadd.f32 %v418, %v582
      %v615 = vadd.f32 %v419, %v583
      %v616 = vadd.f32 %v420, %v584
      %v617 = vadd.f32 %v421, %v585
      %v618 = vadd.f32 %v422, %v586
      %v619 = vadd.f32 %v423, %v587
      %v620 = vadd.f32 %v424, %v588
      %v621 = vadd.f32 %v425, %v589
      %v622 = vadd.f32 %v426, %v590
      %v623 = vadd.f32 %v427, %v591
      %v624 = vadd.f32 %v428, %v592
      %v625 = vadd.f32 %v429, %v593
      %v626 = vadd.f32 %v430, %v594
      %v627 = vadd.f32 %v431, %v595
      %v628 = vadd.f32 %v432, %v596
      %v629 = vadd.f32 %v433, %v597
      %v630 = vadd.f32 %v434, %v598
      %v631 = vlaneseq
      %v632 = vshrl.u32 %v631, 7
      %v633 = vsub.s32 0, %v632
      %v634 = vrot.slane %v236, %v633
      %v635 = vadd.f32 %v599, %v634
      %v636 = vadd.f32 %v600, %v634
      %v637 = vadd.f32 %v601, %v634
      %v638 = vadd.f32 %v602, %v634
      %v639 = vadd.f32 %v603, %v634
      %v640 = vadd.f32 %v604, %v634
      %v641 = vadd.f32 %v605, %v634
      %v642 = vadd.f32 %v606, %v634
      %v643 = vadd.f32 %v607, %v634
      %v644 = vadd.f32 %v608, %v634
      %v645 = vadd.f32 %v609, %v634
      %v646 = vadd.f32 %v610, %v634
      %v647 = vadd.f32 %v611, %v634
      %v648 = vadd.f32 %v612, %v634
      %v649 = vadd.f32 %v613, %v634
      %v650 = vadd.f32 %v614, %v634
      %v651 = vadd.f32 %v615, %v634
      %v652 = vadd.f32 %v616, %v634
      %v653 = vadd.f32 %v617, %v634
      %v654 = vadd.f32 %v618, %v634
      %v655 = vadd.f32 %v619, %v634
      %v656 = vadd.f32 %v620, %v634
      %v657 = vadd.f32 %v621, %v634
      %v658 = vadd.f32 %v622, %v634
      %v659 = vadd.f32 %v623, %v634
      %v660 = vadd.f32 %v624, %v634
      %v661 = vadd.f32 %v625, %v634
      %v662 = vadd.f32 %v626, %v634
      %v663 = vadd.f32 %v627, %v634
      %v664 = vadd.f32 %v628, %v634
      %v665 = vadd.f32 %v629, %v634
      %v666 = vadd.f32 %v630, %v634
      %v667 = vmax.f32 %v635, 0.0
      %v668 = vmax.f32 %v636, 0.0
      %v669 = vmax.f32 %v637, 0.0
      %v670 = vmax.f32 %v638, 0.0
      %v671 = vmax.f32 %v639, 0.0
      %v672 = vmax.f32 %v640, 0.0
      %v673 = vmax.f32 %v641, 0.0
      %v674 = vmax.f32 %v642, 0.0
      %v675 = vmax.f32 %v643, 0.0
      %v676 = vmax.f32 %v644, 0.0
      %v677 = vmax.f32 %v645, 0.0
      %v678 = vmax.f32 %v646, 0.0
      %v679 = vmax.f32 %v647, 0.0
      %v680 = vmax.f32 %v648, 0.0
      %v681 = vmax.f32 %v649, 0.0
      %v682 = vmax.f32 %v650, 0.0
      %v683 = vmax.f32 %v651, 0.0
      %v684 = vmax.f32 %v652, 0.0
      %v685 = vmax.f32 %v653, 0.0
      %v686 = vmax.f32 %v654, 0.0
      %v687 = vmax.f32 %v655, 0.0
      %v688 = vmax.f32 %v656, 0.0
      %v689 = vmax.f32 %v657, 0.0
      %v690 = vmax.f32 %v658, 0.0
      %v691 = vmax.f32 %v659, 0.0
      %v692 = vmax.f32 %v660, 0.0
      %v693 = vmax.f32 %v661, 0.0
      %v694 = vmax.f32 %v662, 0.0
      %v695 = vmax.f32 %v663, 0.0
      %v696 = vmax.f32 %v664, 0.0
      %v697 = vmax.f32 %v665, 0.0
      %v698 = vmax.f32 %v666, 0.0
      %v699 = vpack.c.bf16 %v668, %v667
      %v700 = vpack.c.bf16 %v670, %v669
      %v701 = vpack.c.bf16 %v672, %v671
      %v702 = vpack.c.bf16 %v674, %v673
      %v703 = vpack.c.bf16 %v676, %v675
      %v704 = vpack.c.bf16 %v678, %v677
      %v705 = vpack.c.bf16 %v680, %v679
      %v706 = vpack.c.bf16 %v682, %v681
      %v707 = vpack.c.bf16 %v684, %v683
      %v708 = vpack.c.bf16 %v686, %v685
      %v709 = vpack.c.bf16 %v688, %v687
      %v710 = vpack.c.bf16 %v690, %v689
      %v711 = vpack.c.bf16 %v692, %v691
      %v712 = vpack.c.bf16 %v694, %v693
      %v713 = vpack.c.bf16 %v696, %v695
      %v714 = vpack.c.bf16 %v698, %v697
      %v715 = vld [vmem:[%s2] sm:$0xf]
      %v716 = vld [vmem:[%s2 + $0x4] sm:$0xf]
      %v717 = vld [vmem:[%s2 + $0x8] sm:$0xf]
      %v718 = vld [vmem:[%s2 + $0xc] sm:$0xf]
      %v719 = vld [vmem:[%s2 + $0x10] sm:$0xf]
      %v720 = vld [vmem:[%s2 + $0x14] sm:$0xf]
      %v721 = vld [vmem:[%s2 + $0x18] sm:$0xf]
      %v722 = vld [vmem:[%s2 + $0x1c] sm:$0xf]
      %v723 = vld [vmem:[%s2 + $0x20] sm:$0xf]
      %v724 = vld [vmem:[%s2 + $0x24] sm:$0xf]
      %v725 = vld [vmem:[%s2 + $0x28] sm:$0xf]
      %v726 = vld [vmem:[%s2 + $0x2c] sm:$0xf]
      %v727 = vld [vmem:[%s2 + $0x30] sm:$0xf]
      %v728 = vld [vmem:[%s2 + $0x34] sm:$0xf]
      %v729 = vld [vmem:[%s2 + $0x38] sm:$0xf]
      %v730 = vld [vmem:[%s2 + $0x3c] sm:$0xf]
      %v731 = vlaneseq
      %v732 = vshrl.u32 %v731, 7
      %v733 = vsub.s32 0, %v732
      %v734 = vrot.slane %v237, %v733
      %v751 = vunpack.c.l.b16 %v715
      %v752 = vunpack.c.l.b16 %v716
      %v753 = vunpack.c.l.b16 %v717
      %v754 = vunpack.c.l.b16 %v718
      %v755 = vunpack.c.l.b16 %v719
      %v756 = vunpack.c.l.b16 %v720
      %v757 = vunpack.c.l.b16 %v721
      %v758 = vunpack.c.l.b16 %v722
      %v759 = vunpack.c.l.b16 %v723
      %v760 = vunpack.c.l.b16 %v724
      %v761 = vunpack.c.l.b16 %v725
      %v762 = vunpack.c.l.b16 %v726
      %v763 = vunpack.c.l.b16 %v727
      %v764 = vunpack.c.l.b16 %v728
      %v765 = vunpack.c.l.b16 %v729
      %v766 = vunpack.c.l.b16 %v730
      %v767 = vpack.c.b16 %v752, %v751
      %v768 = vpack.c.b16 %v754, %v753
      %v769 = vpack.c.b16 %v756, %v755
      %v770 = vpack.c.b16 %v758, %v757
      %v771 = vpack.c.b16 %v760, %v759
      %v772 = vpack.c.b16 %v762, %v761
      %v773 = vpack.c.b16 %v764, %v763
      %v774 = vpack.c.b16 %v766, %v765
      %783 = vmatprep.subr.bf16.mxu0 0
      %784 = vmatpush1.bf16.msra.mxu0 %v767
      %785 = vmatprep.subr.bf16.mxu0 0
      %786 = vmatpush1.bf16.msra.mxu0 %v768
      %787 = vmatprep.subr.bf16.mxu0 0
      %788 = vmatpush1.bf16.msra.mxu0 %v769
      %789 = vmatprep.subr.bf16.mxu0 0
      %790 = vmatpush1.bf16.msra.mxu0 %v770
      %791 = vmatprep.subr.bf16.mxu0 0
      %792 = vmatpush1.bf16.msra.mxu0 %v771
      %793 = vmatprep.subr.bf16.mxu0 0
      %794 = vmatpush1.bf16.msra.mxu0 %v772
      %795 = vmatprep.subr.bf16.mxu0 0
      %796 = vmatpush1.bf16.msra.mxu0 %v773
      %797 = vmatprep.subr.bf16.mxu0 0
      %798 = vmatpush1.bf16.msra.mxu0 %v774
      %799 = vmatprep.subr.bf16.mxu0 0
      %800 = vmatpush1.bf16.msra.mxu0 0
      %801 = vmatprep.subr.bf16.mxu0 0
      %802 = vmatpush1.bf16.msra.mxu0 0
      %803 = vmatprep.subr.bf16.mxu0 0
      %804 = vmatpush1.bf16.msra.mxu0 0
      %805 = vmatprep.subr.bf16.mxu0 0
      %806 = vmatpush1.bf16.msra.mxu0 0
      %807 = vmatprep.subr.bf16.mxu0 0
      %808 = vmatpush1.bf16.msra.mxu0 0
      %809 = vmatprep.subr.bf16.mxu0 0
      %810 = vmatpush1.bf16.msra.mxu0 0
      %811 = vmatprep.subr.bf16.mxu0 0
      %812 = vmatpush1.bf16.msra.mxu0 0
      %813 = vmatprep.subr.bf16.mxu0 0
      %814 = vmatpush1.bf16.msra.mxu0 0
      %815 = vmatprep.mubr.bf16.mxu0 0
      %816 = vmatmul.mubr.bf16.gmra.mrb[0].mxu0 %v699
      %v817 = vpop.f32.mrb[0].mxu0
      %v818 = vadd.f32 %v734, %v817
      %v819 = vpop.f32.mrb[0].mxu0
      %v820 = vpop.f32.mrb[0].mxu0
      %v821 = vadd.f32 %v734, %v820
      %v822 = vpop.f32.mrb[0].mxu0
      %823 = vmatprep.mubr.bf16.mxu0 0
      %824 = vmatmul.mubr.bf16.gmra.mrb[0].mxu0 %v700
      %v825 = vpop.f32.mrb[0].mxu0
      %v826 = vadd.f32 %v734, %v825
      %v827 = vpop.f32.mrb[0].mxu0
      %v828 = vpop.f32.mrb[0].mxu0
      %v829 = vadd.f32 %v734, %v828
      %v830 = vpop.f32.mrb[0].mxu0
      %831 = vmatprep.mubr.bf16.mxu0 0
      %832 = vmatmul.mubr.bf16.gmra.mrb[0].mxu0 %v701
      %v833 = vpop.f32.mrb[0].mxu0
      %v834 = vadd.f32 %v734, %v833
      %v835 = vpop.f32.mrb[0].mxu0
      %v836 = vpop.f32.mrb[0].mxu0
      %v837 = vadd.f32 %v734, %v836
      %v838 = vpop.f32.mrb[0].mxu0
      %839 = vmatprep.mubr.bf16.mxu0 0
      %840 = vmatmul.mubr.bf16.gmra.mrb[0].mxu0 %v702
      %v841 = vpop.f32.mrb[0].mxu0
      %v842 = vadd.f32 %v734, %v841
      %v843 = vpop.f32.mrb[0].mxu0
      %v844 = vpop.f32.mrb[0].mxu0
      %v845 = vadd.f32 %v734, %v844
      %v846 = vpop.f32.mrb[0].mxu0
      %847 = vmatprep.mubr.bf16.mxu0 0
      %848 = vmatmul.mubr.bf16.gmra.mrb[0].mxu0 %v703
      %v849 = vpop.f32.mrb[0].mxu0
      %v850 = vadd.f32 %v734, %v849
      %v851 = vpop.f32.mrb[0].mxu0
      %v852 = vpop.f32.mrb[0].mxu0
      %v853 = vadd.f32 %v734, %v852
      %v854 = vpop.f32.mrb[0].mxu0
      %855 = vmatprep.mubr.bf16.mxu0 0
      %856 = vmatmul.mubr.bf16.gmra.mrb[0].mxu0 %v704
      %v857 = vpop.f32.mrb[0].mxu0
      %v858 = vadd.f32 %v734, %v857
      %v859 = vpop.f32.mrb[0].mxu0
      %v860 = vpop.f32.mrb[0].mxu0
      %v861 = vadd.f32 %v734, %v860
      %v862 = vpop.f32.mrb[0].mxu0
      %863 = vmatprep.mubr.bf16.mxu0 0
      %864 = vmatmul.mubr.bf16.gmra.mrb[0].mxu0 %v705
      %v865 = vpop.f32.mrb[0].mxu0
      %v866 = vadd.f32 %v734, %v865
      %v867 = vpop.f32.mrb[0].mxu0
      %v868 = vpop.f32.mrb[0].mxu0
      %v869 = vadd.f32 %v734, %v868
      %v870 = vpop.f32.mrb[0].mxu0
      %871 = vmatprep.mubr.bf16.mxu0 0
      %872 = vmatmul.mubr.bf16.gmra.mrb[0].mxu0 %v706
      %v873 = vpop.f32.mrb[0].mxu0
      %v874 = vadd.f32 %v734, %v873
      %v875 = vpop.f32.mrb[0].mxu0
      %v876 = vpop.f32.mrb[0].mxu0
      %v877 = vadd.f32 %v734, %v876
      %v878 = vpop.f32.mrb[0].mxu0
      %879 = vmatprep.mubr.bf16.mxu0 0
      %880 = vmatmul.mubr.bf16.gmra.mrb[0].mxu0 %v707
      %v881 = vpop.f32.mrb[0].mxu0
      %v882 = vadd.f32 %v734, %v881
      %v883 = vpop.f32.mrb[0].mxu0
      %v884 = vpop.f32.mrb[0].mxu0
      %v885 = vadd.f32 %v734, %v884
      %v886 = vpop.f32.mrb[0].mxu0
      %887 = vmatprep.mubr.bf16.mxu0 0
      %888 = vmatmul.mubr.bf16.gmra.mrb[0].mxu0 %v708
      %v889 = vpop.f32.mrb[0].mxu0
      %v890 = vadd.f32 %v734, %v889
      %v891 = vpop.f32.mrb[0].mxu0
      %v892 = vpop.f32.mrb[0].mxu0
      %v893 = vadd.f32 %v734, %v892
      %v894 = vpop.f32.mrb[0].mxu0
      %895 = vmatprep.mubr.bf16.mxu0 0
      %896 = vmatmul.mubr.bf16.gmra.mrb[0].mxu0 %v709
      %v897 = vpop.f32.mrb[0].mxu0
      %v898 = vadd.f32 %v734, %v897
      %v899 = vpop.f32.mrb[0].mxu0
      %v900 = vpop.f32.mrb[0].mxu0
      %v901 = vadd.f32 %v734, %v900
      %v902 = vpop.f32.mrb[0].mxu0
      %903 = vmatprep.mubr.bf16.mxu0 0
      %904 = vmatmul.mubr.bf16.gmra.mrb[0].mxu0 %v710
      %v905 = vpop.f32.mrb[0].mxu0
      %v906 = vadd.f32 %v734, %v905
      %v907 = vpop.f32.mrb[0].mxu0
      %v908 = vpop.f32.mrb[0].mxu0
      %v909 = vadd.f32 %v734, %v908
      %v910 = vpop.f32.mrb[0].mxu0
      %911 = vmatprep.mubr.bf16.mxu0 0
      %912 = vmatmul.mubr.bf16.gmra.mrb[0].mxu0 %v711
      %v913 = vpop.f32.mrb[0].mxu0
      %v914 = vadd.f32 %v734, %v913
      %v915 = vpop.f32.mrb[0].mxu0
      %v916 = vpop.f32.mrb[0].mxu0
      %v917 = vadd.f32 %v734, %v916
      %v918 = vpop.f32.mrb[0].mxu0
      %919 = vmatprep.mubr.bf16.mxu0 0
      %920 = vmatmul.mubr.bf16.gmra.mrb[0].mxu0 %v712
      %v921 = vpop.f32.mrb[0].mxu0
      %v922 = vadd.f32 %v734, %v921
      %v923 = vpop.f32.mrb[0].mxu0
      %v924 = vpop.f32.mrb[0].mxu0
      %v925 = vadd.f32 %v734, %v924
      %v926 = vpop.f32.mrb[0].mxu0
      %927 = vmatprep.mubr.bf16.mxu0 0
      %928 = vmatmul.mubr.bf16.gmra.mrb[0].mxu0 %v713
      %v929 = vpop.f32.mrb[0].mxu0
      %v930 = vadd.f32 %v734, %v929
      %v931 = vpop.f32.mrb[0].mxu0
      %v932 = vpop.f32.mrb[0].mxu0
      %v933 = vadd.f32 %v734, %v932
      %v934 = vpop.f32.mrb[0].mxu0
      %935 = vmatprep.mubr.bf16.mxu0 0
      %936 = vmatmul.mubr.bf16.gmra.mrb[0].mxu0 %v714
      %v937 = vpop.f32.mrb[0].mxu0
      %v938 = vadd.f32 %v734, %v937
      %v939 = vpop.f32.mrb[0].mxu0
      %v940 = vpop.f32.mrb[0].mxu0
      %v941 = vadd.f32 %v734, %v940
      %v942 = vpop.f32.mrb[0].mxu0
      %943 = vdwg.mxu0
      %v944 = vmax.f32 %v818, 0.0
      %v945 = vmax.f32 %v821, 0.0
      %v946 = vmax.f32 %v826, 0.0
      %v947 = vmax.f32 %v829, 0.0
      %v948 = vmax.f32 %v834, 0.0
      %v949 = vmax.f32 %v837, 0.0
      %v950 = vmax.f32 %v842, 0.0
      %v951 = vmax.f32 %v845, 0.0
      %v952 = vmax.f32 %v850, 0.0
      %v953 = vmax.f32 %v853, 0.0
      %v954 = vmax.f32 %v858, 0.0
      %v955 = vmax.f32 %v861, 0.0
      %v956 = vmax.f32 %v866, 0.0
      %v957 = vmax.f32 %v869, 0.0
      %v958 = vmax.f32 %v874, 0.0
      %v959 = vmax.f32 %v877, 0.0
      %v960 = vmax.f32 %v882, 0.0
      %v961 = vmax.f32 %v885, 0.0
      %v962 = vmax.f32 %v890, 0.0
      %v963 = vmax.f32 %v893, 0.0
      %v964 = vmax.f32 %v898, 0.0
      %v965 = vmax.f32 %v901, 0.0
      %v966 = vmax.f32 %v906, 0.0
      %v967 = vmax.f32 %v909, 0.0
      %v968 = vmax.f32 %v914, 0.0
      %v969 = vmax.f32 %v917, 0.0
      %v970 = vmax.f32 %v922, 0.0
      %v971 = vmax.f32 %v925, 0.0
      %v972 = vmax.f32 %v930, 0.0
      %v973 = vmax.f32 %v933, 0.0
      %v974 = vmax.f32 %v938, 0.0
      %v975 = vmax.f32 %v941, 0.0
      %v976 = vpack.c.bf16 %v945, %v944
      %v977 = vpack.c.bf16 %v947, %v946
      %v978 = vpack.c.bf16 %v949, %v948
      %v979 = vpack.c.bf16 %v951, %v950
      %v980 = vpack.c.bf16 %v953, %v952
      %v981 = vpack.c.bf16 %v955, %v954
      %v982 = vpack.c.bf16 %v957, %v956
      %v983 = vpack.c.bf16 %v959, %v958
      %v984 = vpack.c.bf16 %v961, %v960
      %v985 = vpack.c.bf16 %v963, %v962
      %v986 = vpack.c.bf16 %v965, %v964
      %v987 = vpack.c.bf16 %v967, %v966
      %v988 = vpack.c.bf16 %v969, %v968
      %v989 = vpack.c.bf16 %v971, %v970
      %v990 = vpack.c.bf16 %v973, %v972
      %v991 = vpack.c.bf16 %v975, %v974
      %v992 = vld [vmem:[%s3] sm:$0xf]
      %v993 = vld [vmem:[%s3 + $0x4] sm:$0xf]
      %v994 = vld [vmem:[%s3 + $0x8] sm:$0xf]
      %v995 = vld [vmem:[%s3 + $0xc] sm:$0xf]
      %v996 = vld [vmem:[%s3 + $0x10] sm:$0xf]
      %v997 = vld [vmem:[%s3 + $0x14] sm:$0xf]
      %v998 = vld [vmem:[%s3 + $0x18] sm:$0xf]
      %v999 = vld [vmem:[%s3 + $0x1c] sm:$0xf]
      %v1000 = vld [vmem:[%s3 + $0x20] sm:$0xf]
      %v1001 = vld [vmem:[%s3 + $0x24] sm:$0xf]
      %v1002 = vld [vmem:[%s3 + $0x28] sm:$0xf]
      %v1003 = vld [vmem:[%s3 + $0x2c] sm:$0xf]
      %v1004 = vld [vmem:[%s3 + $0x30] sm:$0xf]
      %v1005 = vld [vmem:[%s3 + $0x34] sm:$0xf]
      %v1006 = vld [vmem:[%s3 + $0x38] sm:$0xf]
      %v1007 = vld [vmem:[%s3 + $0x3c] sm:$0xf]
      %v1008 = vlaneseq
      %v1009 = vshrl.u32 %v1008, 7
      %v1010 = vsub.s32 0, %v1009
      %v1011 = vrot.slane %v238, %v1010
      %v1028 = vunpack.c.l.b16 %v992
      %v1029 = vunpack.c.l.b16 %v993
      %v1030 = vunpack.c.l.b16 %v994
      %v1031 = vunpack.c.l.b16 %v995
      %v1032 = vunpack.c.l.b16 %v996
      %v1033 = vunpack.c.l.b16 %v997
      %v1034 = vunpack.c.l.b16 %v998
      %v1035 = vunpack.c.l.b16 %v999
      %v1036 = vunpack.c.l.b16 %v1000
      %v1037 = vunpack.c.l.b16 %v1001
      %v1038 = vunpack.c.l.b16 %v1002
      %v1039 = vunpack.c.l.b16 %v1003
      %v1040 = vunpack.c.l.b16 %v1004
      %v1041 = vunpack.c.l.b16 %v1005
      %v1042 = vunpack.c.l.b16 %v1006
      %v1043 = vunpack.c.l.b16 %v1007
      %v1044 = vpack.c.b16 %v1029, %v1028
      %v1045 = vpack.c.b16 %v1031, %v1030
      %v1046 = vpack.c.b16 %v1033, %v1032
      %v1047 = vpack.c.b16 %v1035, %v1034
      %v1048 = vpack.c.b16 %v1037, %v1036
      %v1049 = vpack.c.b16 %v1039, %v1038
      %v1050 = vpack.c.b16 %v1041, %v1040
      %v1051 = vpack.c.b16 %v1043, %v1042
      %1060 = vmatprep.subr.bf16.mxu0 0
      %1061 = vmatpush1.bf16.msra.mxu0 %v1044
      %1062 = vmatprep.subr.bf16.mxu0 0
      %1063 = vmatpush1.bf16.msra.mxu0 %v1045
      %1064 = vmatprep.subr.bf16.mxu0 0
      %1065 = vmatpush1.bf16.msra.mxu0 %v1046
      %1066 = vmatprep.subr.bf16.mxu0 0
      %1067 = vmatpush1.bf16.msra.mxu0 %v1047
      %1068 = vmatprep.subr.bf16.mxu0 0
      %1069 = vmatpush1.bf16.msra.mxu0 %v1048
      %1070 = vmatprep.subr.bf16.mxu0 0
      %1071 = vmatpush1.bf16.msra.mxu0 %v1049
      %1072 = vmatprep.subr.bf16.mxu0 0
      %1073 = vmatpush1.bf16.msra.mxu0 %v1050
      %1074 = vmatprep.subr.bf16.mxu0 0
      %1075 = vmatpush1.bf16.msra.mxu0 %v1051
      %1076 = vmatprep.subr.bf16.mxu0 0
      %1077 = vmatpush1.bf16.msra.mxu0 0
      %1078 = vmatprep.subr.bf16.mxu0 0
      %1079 = vmatpush1.bf16.msra.mxu0 0
      %1080 = vmatprep.subr.bf16.mxu0 0
      %1081 = vmatpush1.bf16.msra.mxu0 0
      %1082 = vmatprep.subr.bf16.mxu0 0
      %1083 = vmatpush1.bf16.msra.mxu0 0
      %1084 = vmatprep.subr.bf16.mxu0 0
      %1085 = vmatpush1.bf16.msra.mxu0 0
      %1086 = vmatprep.subr.bf16.mxu0 0
      %1087 = vmatpush1.bf16.msra.mxu0 0
      %1088 = vmatprep.subr.bf16.mxu0 0
      %1089 = vmatpush1.bf16.msra.mxu0 0
      %1090 = vmatprep.subr.bf16.mxu0 0
      %1091 = vmatpush1.bf16.msra.mxu0 0
      %1092 = vmatprep.mubr.bf16.mxu0 0
      %1093 = vmatmul.mubr.bf16.gmra.mrb[0].mxu0 %v976
      %v1094 = vpop.f32.mrb[0].mxu0
      %v1095 = vadd.f32 %v1011, %v1094
      %v1096 = vpop.f32.mrb[0].mxu0
      %v1097 = vpop.f32.mrb[0].mxu0
      %v1098 = vadd.f32 %v1011, %v1097
      %v1099 = vpop.f32.mrb[0].mxu0
      %1100 = vmatprep.mubr.bf16.mxu0 0
      %1101 = vmatmul.mubr.bf16.gmra.mrb[0].mxu0 %v977
      %v1102 = vpop.f32.mrb[0].mxu0
      %v1103 = vadd.f32 %v1011, %v1102
      %v1104 = vpop.f32.mrb[0].mxu0
      %v1105 = vpop.f32.mrb[0].mxu0
      %v1106 = vadd.f32 %v1011, %v1105
      %v1107 = vpop.f32.mrb[0].mxu0
      %1108 = vmatprep.mubr.bf16.mxu0 0
      %1109 = vmatmul.mubr.bf16.gmra.mrb[0].mxu0 %v978
      %v1110 = vpop.f32.mrb[0].mxu0
      %v1111 = vadd.f32 %v1011, %v1110
      %v1112 = vpop.f32.mrb[0].mxu0
      %v1113 = vpop.f32.mrb[0].mxu0
      %v1114 = vadd.f32 %v1011, %v1113
      %v1115 = vpop.f32.mrb[0].mxu0
      %1116 = vmatprep.mubr.bf16.mxu0 0
      %1117 = vmatmul.mubr.bf16.gmra.mrb[0].mxu0 %v979
      %v1118 = vpop.f32.mrb[0].mxu0
      %v1119 = vadd.f32 %v1011, %v1118
      %v1120 = vpop.f32.mrb[0].mxu0
      %v1121 = vpop.f32.mrb[0].mxu0
      %v1122 = vadd.f32 %v1011, %v1121
      %v1123 = vpop.f32.mrb[0].mxu0
      %1124 = vmatprep.mubr.bf16.mxu0 0
      %1125 = vmatmul.mubr.bf16.gmra.mrb[0].mxu0 %v980
      %v1126 = vpop.f32.mrb[0].mxu0
      %v1127 = vadd.f32 %v1011, %v1126
      %v1128 = vpop.f32.mrb[0].mxu0
      %v1129 = vpop.f32.mrb[0].mxu0
      %v1130 = vadd.f32 %v1011, %v1129
      %v1131 = vpop.f32.mrb[0].mxu0
      %1132 = vmatprep.mubr.bf16.mxu0 0
      %1133 = vmatmul.mubr.bf16.gmra.mrb[0].mxu0 %v981
      %v1134 = vpop.f32.mrb[0].mxu0
      %v1135 = vadd.f32 %v1011, %v1134
      %v1136 = vpop.f32.mrb[0].mxu0
      %v1137 = vpop.f32.mrb[0].mxu0
      %v1138 = vadd.f32 %v1011, %v1137
      %v1139 = vpop.f32.mrb[0].mxu0
      %1140 = vmatprep.mubr.bf16.mxu0 0
      %1141 = vmatmul.mubr.bf16.gmra.mrb[0].mxu0 %v982
      %v1142 = vpop.f32.mrb[0].mxu0
      %v1143 = vadd.f32 %v1011, %v1142
      %v1144 = vpop.f32.mrb[0].mxu0
      %v1145 = vpop.f32.mrb[0].mxu0
      %v1146 = vadd.f32 %v1011, %v1145
      %v1147 = vpop.f32.mrb[0].mxu0
      %1148 = vmatprep.mubr.bf16.mxu0 0
      %1149 = vmatmul.mubr.bf16.gmra.mrb[0].mxu0 %v983
      %v1150 = vpop.f32.mrb[0].mxu0
      %v1151 = vadd.f32 %v1011, %v1150
      %v1152 = vpop.f32.mrb[0].mxu0
      %v1153 = vpop.f32.mrb[0].mxu0
      %v1154 = vadd.f32 %v1011, %v1153
      %v1155 = vpop.f32.mrb[0].mxu0
      %1156 = vmatprep.mubr.bf16.mxu0 0
      %1157 = vmatmul.mubr.bf16.gmra.mrb[0].mxu0 %v984
      %v1158 = vpop.f32.mrb[0].mxu0
      %v1159 = vadd.f32 %v1011, %v1158
      %v1160 = vpop.f32.mrb[0].mxu0
      %v1161 = vpop.f32.mrb[0].mxu0
      %v1162 = vadd.f32 %v1011, %v1161
      %v1163 = vpop.f32.mrb[0].mxu0
      %1164 = vmatprep.mubr.bf16.mxu0 0
      %1165 = vmatmul.mubr.bf16.gmra.mrb[0].mxu0 %v985
      %v1166 = vpop.f32.mrb[0].mxu0
      %v1167 = vadd.f32 %v1011, %v1166
      %v1168 = vpop.f32.mrb[0].mxu0
      %v1169 = vpop.f32.mrb[0].mxu0
      %v1170 = vadd.f32 %v1011, %v1169
      %v1171 = vpop.f32.mrb[0].mxu0
      %1172 = vmatprep.mubr.bf16.mxu0 0
      %1173 = vmatmul.mubr.bf16.gmra.mrb[0].mxu0 %v986
      %v1174 = vpop.f32.mrb[0].mxu0
      %v1175 = vadd.f32 %v1011, %v1174
      %v1176 = vpop.f32.mrb[0].mxu0
      %v1177 = vpop.f32.mrb[0].mxu0
      %v1178 = vadd.f32 %v1011, %v1177
      %v1179 = vpop.f32.mrb[0].mxu0
      %1180 = vmatprep.mubr.bf16.mxu0 0
      %1181 = vmatmul.mubr.bf16.gmra.mrb[0].mxu0 %v987
      %v1182 = vpop.f32.mrb[0].mxu0
      %v1183 = vadd.f32 %v1011, %v1182
      %v1184 = vpop.f32.mrb[0].mxu0
      %v1185 = vpop.f32.mrb[0].mxu0
      %v1186 = vadd.f32 %v1011, %v1185
      %v1187 = vpop.f32.mrb[0].mxu0
      %1188 = vmatprep.mubr.bf16.mxu0 0
      %1189 = vmatmul.mubr.bf16.gmra.mrb[0].mxu0 %v988
      %v1190 = vpop.f32.mrb[0].mxu0
      %v1191 = vadd.f32 %v1011, %v1190
      %v1192 = vpop.f32.mrb[0].mxu0
      %v1193 = vpop.f32.mrb[0].mxu0
      %v1194 = vadd.f32 %v1011, %v1193
      %v1195 = vpop.f32.mrb[0].mxu0
      %1196 = vmatprep.mubr.bf16.mxu0 0
      %1197 = vmatmul.mubr.bf16.gmra.mrb[0].mxu0 %v989
      %v1198 = vpop.f32.mrb[0].mxu0
      %v1199 = vadd.f32 %v1011, %v1198
      %v1200 = vpop.f32.mrb[0].mxu0
      %v1201 = vpop.f32.mrb[0].mxu0
      %v1202 = vadd.f32 %v1011, %v1201
      %v1203 = vpop.f32.mrb[0].mxu0
      %1204 = vmatprep.mubr.bf16.mxu0 0
      %1205 = vmatmul.mubr.bf16.gmra.mrb[0].mxu0 %v990
      %v1206 = vpop.f32.mrb[0].mxu0
      %v1207 = vadd.f32 %v1011, %v1206
      %v1208 = vpop.f32.mrb[0].mxu0
      %v1209 = vpop.f32.mrb[0].mxu0
      %v1210 = vadd.f32 %v1011, %v1209
      %v1211 = vpop.f32.mrb[0].mxu0
      %1212 = vmatprep.mubr.bf16.mxu0 0
      %1213 = vmatmul.mubr.bf16.gmra.mrb[0].mxu0 %v991
      %v1214 = vpop.f32.mrb[0].mxu0
      %v1215 = vadd.f32 %v1011, %v1214
      %v1216 = vpop.f32.mrb[0].mxu0
      %v1217 = vpop.f32.mrb[0].mxu0
      %v1218 = vadd.f32 %v1011, %v1217
      %v1219 = vpop.f32.mrb[0].mxu0
      %1220 = vdwg.mxu0
      %v1221 = vlaneseq
      %v1222 = vand.u32 %v1221, 127
      %vm1223 = vcmp.lt.s32.totalorder %v1222, 4
      %v1224 = vsel %vm1223, %v1095, -1e+30
      %v1225 = vsel %vm1223, %v1098, -1e+30
      %v1226 = vsel %vm1223, %v1103, -1e+30
      %v1227 = vsel %vm1223, %v1106, -1e+30
      %v1228 = vsel %vm1223, %v1111, -1e+30
      %v1229 = vsel %vm1223, %v1114, -1e+30
      %v1230 = vsel %vm1223, %v1119, -1e+30
      %v1231 = vsel %vm1223, %v1122, -1e+30
      %v1232 = vsel %vm1223, %v1127, -1e+30
      %v1233 = vsel %vm1223, %v1130, -1e+30
      %v1234 = vsel %vm1223, %v1135, -1e+30
      %v1235 = vsel %vm1223, %v1138, -1e+30
      %v1236 = vsel %vm1223, %v1143, -1e+30
      %v1237 = vsel %vm1223, %v1146, -1e+30
      %v1238 = vsel %vm1223, %v1151, -1e+30
      %v1239 = vsel %vm1223, %v1154, -1e+30
      %v1240 = vsel %vm1223, %v1159, -1e+30
      %v1241 = vsel %vm1223, %v1162, -1e+30
      %v1242 = vsel %vm1223, %v1167, -1e+30
      %v1243 = vsel %vm1223, %v1170, -1e+30
      %v1244 = vsel %vm1223, %v1175, -1e+30
      %v1245 = vsel %vm1223, %v1178, -1e+30
      %v1246 = vsel %vm1223, %v1183, -1e+30
      %v1247 = vsel %vm1223, %v1186, -1e+30
      %v1248 = vsel %vm1223, %v1191, -1e+30
      %v1249 = vsel %vm1223, %v1194, -1e+30
      %v1250 = vsel %vm1223, %v1199, -1e+30
      %v1251 = vsel %vm1223, %v1202, -1e+30
      %v1252 = vsel %vm1223, %v1207, -1e+30
      %v1253 = vsel %vm1223, %v1210, -1e+30
      %v1254 = vsel %vm1223, %v1215, -1e+30
      %v1255 = vsel %vm1223, %v1218, -1e+30
      %1256 = vmax.xlane.f32.xlu0 %v1224
      %v1257 = vpop.xlane.xlu0 %1256
      %1258 = vmax.xlane.f32.xlu0 %v1225
      %v1259 = vpop.xlane.xlu0 %1258
      %1260 = vmax.xlane.f32.xlu0 %v1226
      %v1261 = vpop.xlane.xlu0 %1260
      %1262 = vmax.xlane.f32.xlu0 %v1227
      %v1263 = vpop.xlane.xlu0 %1262
      %1264 = vmax.xlane.f32.xlu0 %v1228
      %v1265 = vpop.xlane.xlu0 %1264
      %1266 = vmax.xlane.f32.xlu0 %v1229
      %v1267 = vpop.xlane.xlu0 %1266
      %1268 = vmax.xlane.f32.xlu0 %v1230
      %v1269 = vpop.xlane.xlu0 %1268
      %1270 = vmax.xlane.f32.xlu0 %v1231
      %v1271 = vpop.xlane.xlu0 %1270
      %1272 = vmax.xlane.f32.xlu0 %v1232
      %v1273 = vpop.xlane.xlu0 %1272
      %1274 = vmax.xlane.f32.xlu0 %v1233
      %v1275 = vpop.xlane.xlu0 %1274
      %1276 = vmax.xlane.f32.xlu0 %v1234
      %v1277 = vpop.xlane.xlu0 %1276
      %1278 = vmax.xlane.f32.xlu0 %v1235
      %v1279 = vpop.xlane.xlu0 %1278
      %1280 = vmax.xlane.f32.xlu0 %v1236
      %v1281 = vpop.xlane.xlu0 %1280
      %1282 = vmax.xlane.f32.xlu0 %v1237
      %v1283 = vpop.xlane.xlu0 %1282
      %1284 = vmax.xlane.f32.xlu0 %v1238
      %v1285 = vpop.xlane.xlu0 %1284
      %1286 = vmax.xlane.f32.xlu0 %v1239
      %v1287 = vpop.xlane.xlu0 %1286
      %1288 = vmax.xlane.f32.xlu0 %v1240
      %v1289 = vpop.xlane.xlu0 %1288
      %1290 = vmax.xlane.f32.xlu0 %v1241
      %v1291 = vpop.xlane.xlu0 %1290
      %1292 = vmax.xlane.f32.xlu0 %v1242
      %v1293 = vpop.xlane.xlu0 %1292
      %1294 = vmax.xlane.f32.xlu0 %v1243
      %v1295 = vpop.xlane.xlu0 %1294
      %1296 = vmax.xlane.f32.xlu0 %v1244
      %v1297 = vpop.xlane.xlu0 %1296
      %1298 = vmax.xlane.f32.xlu0 %v1245
      %v1299 = vpop.xlane.xlu0 %1298
      %1300 = vmax.xlane.f32.xlu0 %v1246
      %v1301 = vpop.xlane.xlu0 %1300
      %1302 = vmax.xlane.f32.xlu0 %v1247
      %v1303 = vpop.xlane.xlu0 %1302
      %1304 = vmax.xlane.f32.xlu0 %v1248
      %v1305 = vpop.xlane.xlu0 %1304
      %1306 = vmax.xlane.f32.xlu0 %v1249
      %v1307 = vpop.xlane.xlu0 %1306
      %1308 = vmax.xlane.f32.xlu0 %v1250
      %v1309 = vpop.xlane.xlu0 %1308
      %1310 = vmax.xlane.f32.xlu0 %v1251
      %v1311 = vpop.xlane.xlu0 %1310
      %1312 = vmax.xlane.f32.xlu0 %v1252
      %v1313 = vpop.xlane.xlu0 %1312
      %1314 = vmax.xlane.f32.xlu0 %v1253
      %v1315 = vpop.xlane.xlu0 %1314
      %1316 = vmax.xlane.f32.xlu0 %v1254
      %v1317 = vpop.xlane.xlu0 %1316
      %1318 = vmax.xlane.f32.xlu0 %v1255
      %v1319 = vpop.xlane.xlu0 %1318
      %v1320 = vsub.f32 %v1224, %v1257
      %v1321 = vsub.f32 %v1225, %v1259
      %v1322 = vsub.f32 %v1226, %v1261
      %v1323 = vsub.f32 %v1227, %v1263
      %v1324 = vsub.f32 %v1228, %v1265
      %v1325 = vsub.f32 %v1229, %v1267
      %v1326 = vsub.f32 %v1230, %v1269
      %v1327 = vsub.f32 %v1231, %v1271
      %v1328 = vsub.f32 %v1232, %v1273
      %v1329 = vsub.f32 %v1233, %v1275
      %v1330 = vsub.f32 %v1234, %v1277
      %v1331 = vsub.f32 %v1235, %v1279
      %v1332 = vsub.f32 %v1236, %v1281
      %v1333 = vsub.f32 %v1237, %v1283
      %v1334 = vsub.f32 %v1238, %v1285
      %v1335 = vsub.f32 %v1239, %v1287
      %v1336 = vsub.f32 %v1240, %v1289
      %v1337 = vsub.f32 %v1241, %v1291
      %v1338 = vsub.f32 %v1242, %v1293
      %v1339 = vsub.f32 %v1243, %v1295
      %v1340 = vsub.f32 %v1244, %v1297
      %v1341 = vsub.f32 %v1245, %v1299
      %v1342 = vsub.f32 %v1246, %v1301
      %v1343 = vsub.f32 %v1247, %v1303
      %v1344 = vsub.f32 %v1248, %v1305
      %v1345 = vsub.f32 %v1249, %v1307
      %v1346 = vsub.f32 %v1250, %v1309
      %v1347 = vsub.f32 %v1251, %v1311
      %v1348 = vsub.f32 %v1252, %v1313
      %v1349 = vsub.f32 %v1253, %v1315
      %v1350 = vsub.f32 %v1254, %v1317
      %v1351 = vsub.f32 %v1255, %v1319
      %v1352 = vmul.f32 %v1320, 1.442695
      %v1353 = vpow.pop %v1352
      %v1354 = vmul.f32 %v1321, 1.442695
      %v1355 = vpow.pop %v1354
      %v1356 = vmul.f32 %v1322, 1.442695
      %v1357 = vpow.pop %v1356
      %v1358 = vmul.f32 %v1323, 1.442695
      %v1359 = vpow.pop %v1358
      %v1360 = vmul.f32 %v1324, 1.442695
      %v1361 = vpow.pop %v1360
      %v1362 = vmul.f32 %v1325, 1.442695
      %v1363 = vpow.pop %v1362
      %v1364 = vmul.f32 %v1326, 1.442695
      %v1365 = vpow.pop %v1364
      %v1366 = vmul.f32 %v1327, 1.442695
      %v1367 = vpow.pop %v1366
      %v1368 = vmul.f32 %v1328, 1.442695
      %v1369 = vpow.pop %v1368
      %v1370 = vmul.f32 %v1329, 1.442695
      %v1371 = vpow.pop %v1370
      %v1372 = vmul.f32 %v1330, 1.442695
      %v1373 = vpow.pop %v1372
      %v1374 = vmul.f32 %v1331, 1.442695
      %v1375 = vpow.pop %v1374
      %v1376 = vmul.f32 %v1332, 1.442695
      %v1377 = vpow.pop %v1376
      %v1378 = vmul.f32 %v1333, 1.442695
      %v1379 = vpow.pop %v1378
      %v1380 = vmul.f32 %v1334, 1.442695
      %v1381 = vpow.pop %v1380
      %v1382 = vmul.f32 %v1335, 1.442695
      %v1383 = vpow.pop %v1382
      %v1384 = vmul.f32 %v1336, 1.442695
      %v1385 = vpow.pop %v1384
      %v1386 = vmul.f32 %v1337, 1.442695
      %v1387 = vpow.pop %v1386
      %v1388 = vmul.f32 %v1338, 1.442695
      %v1389 = vpow.pop %v1388
      %v1390 = vmul.f32 %v1339, 1.442695
      %v1391 = vpow.pop %v1390
      %v1392 = vmul.f32 %v1340, 1.442695
      %v1393 = vpow.pop %v1392
      %v1394 = vmul.f32 %v1341, 1.442695
      %v1395 = vpow.pop %v1394
      %v1396 = vmul.f32 %v1342, 1.442695
      %v1397 = vpow.pop %v1396
      %v1398 = vmul.f32 %v1343, 1.442695
      %v1399 = vpow.pop %v1398
      %v1400 = vmul.f32 %v1344, 1.442695
      %v1401 = vpow.pop %v1400
      %v1402 = vmul.f32 %v1345, 1.442695
      %v1403 = vpow.pop %v1402
      %v1404 = vmul.f32 %v1346, 1.442695
      %v1405 = vpow.pop %v1404
      %v1406 = vmul.f32 %v1347, 1.442695
      %v1407 = vpow.pop %v1406
      %v1408 = vmul.f32 %v1348, 1.442695
      %v1409 = vpow.pop %v1408
      %v1410 = vmul.f32 %v1349, 1.442695
      %v1411 = vpow.pop %v1410
      %v1412 = vmul.f32 %v1350, 1.442695
      %v1413 = vpow.pop %v1412
      %v1414 = vmul.f32 %v1351, 1.442695
      %v1415 = vpow.pop %v1414
      %v1416 = vsel %vm1223, %v1353, 0.0
      %v1417 = vsel %vm1223, %v1355, 0.0
      %v1418 = vsel %vm1223, %v1357, 0.0
      %v1419 = vsel %vm1223, %v1359, 0.0
      %v1420 = vsel %vm1223, %v1361, 0.0
      %v1421 = vsel %vm1223, %v1363, 0.0
      %v1422 = vsel %vm1223, %v1365, 0.0
      %v1423 = vsel %vm1223, %v1367, 0.0
      %v1424 = vsel %vm1223, %v1369, 0.0
      %v1425 = vsel %vm1223, %v1371, 0.0
      %v1426 = vsel %vm1223, %v1373, 0.0
      %v1427 = vsel %vm1223, %v1375, 0.0
      %v1428 = vsel %vm1223, %v1377, 0.0
      %v1429 = vsel %vm1223, %v1379, 0.0
      %v1430 = vsel %vm1223, %v1381, 0.0
      %v1431 = vsel %vm1223, %v1383, 0.0
      %v1432 = vsel %vm1223, %v1385, 0.0
      %v1433 = vsel %vm1223, %v1387, 0.0
      %v1434 = vsel %vm1223, %v1389, 0.0
      %v1435 = vsel %vm1223, %v1391, 0.0
      %v1436 = vsel %vm1223, %v1393, 0.0
      %v1437 = vsel %vm1223, %v1395, 0.0
      %v1438 = vsel %vm1223, %v1397, 0.0
      %v1439 = vsel %vm1223, %v1399, 0.0
      %v1440 = vsel %vm1223, %v1401, 0.0
      %v1441 = vsel %vm1223, %v1403, 0.0
      %v1442 = vsel %vm1223, %v1405, 0.0
      %v1443 = vsel %vm1223, %v1407, 0.0
      %v1444 = vsel %vm1223, %v1409, 0.0
      %v1445 = vsel %vm1223, %v1411, 0.0
      %v1446 = vsel %vm1223, %v1413, 0.0
      %v1447 = vsel %vm1223, %v1415, 0.0
      %1448 = vadd.xlane.f32.xlu0 %v1416
      %v1449 = vpop.xlane.xlu0 %1448
      %1450 = vadd.xlane.f32.xlu0 %v1417
      %v1451 = vpop.xlane.xlu0 %1450
      %1452 = vadd.xlane.f32.xlu0 %v1418
      %v1453 = vpop.xlane.xlu0 %1452
      %1454 = vadd.xlane.f32.xlu0 %v1419
      %v1455 = vpop.xlane.xlu0 %1454
      %1456 = vadd.xlane.f32.xlu0 %v1420
      %v1457 = vpop.xlane.xlu0 %1456
      %1458 = vadd.xlane.f32.xlu0 %v1421
      %v1459 = vpop.xlane.xlu0 %1458
      %1460 = vadd.xlane.f32.xlu0 %v1422
      %v1461 = vpop.xlane.xlu0 %1460
      %1462 = vadd.xlane.f32.xlu0 %v1423
      %v1463 = vpop.xlane.xlu0 %1462
      %1464 = vadd.xlane.f32.xlu0 %v1424
      %v1465 = vpop.xlane.xlu0 %1464
      %1466 = vadd.xlane.f32.xlu0 %v1425
      %v1467 = vpop.xlane.xlu0 %1466
      %1468 = vadd.xlane.f32.xlu0 %v1426
      %v1469 = vpop.xlane.xlu0 %1468
      %1470 = vadd.xlane.f32.xlu0 %v1427
      %v1471 = vpop.xlane.xlu0 %1470
      %1472 = vadd.xlane.f32.xlu0 %v1428
      %v1473 = vpop.xlane.xlu0 %1472
      %1474 = vadd.xlane.f32.xlu0 %v1429
      %v1475 = vpop.xlane.xlu0 %1474
      %1476 = vadd.xlane.f32.xlu0 %v1430
      %v1477 = vpop.xlane.xlu0 %1476
      %1478 = vadd.xlane.f32.xlu0 %v1431
      %v1479 = vpop.xlane.xlu0 %1478
      %1480 = vadd.xlane.f32.xlu0 %v1432
      %v1481 = vpop.xlane.xlu0 %1480
      %1482 = vadd.xlane.f32.xlu0 %v1433
      %v1483 = vpop.xlane.xlu0 %1482
      %1484 = vadd.xlane.f32.xlu0 %v1434
      %v1485 = vpop.xlane.xlu0 %1484
      %1486 = vadd.xlane.f32.xlu0 %v1435
      %v1487 = vpop.xlane.xlu0 %1486
      %1488 = vadd.xlane.f32.xlu0 %v1436
      %v1489 = vpop.xlane.xlu0 %1488
      %1490 = vadd.xlane.f32.xlu0 %v1437
      %v1491 = vpop.xlane.xlu0 %1490
      %1492 = vadd.xlane.f32.xlu0 %v1438
      %v1493 = vpop.xlane.xlu0 %1492
      %1494 = vadd.xlane.f32.xlu0 %v1439
      %v1495 = vpop.xlane.xlu0 %1494
      %1496 = vadd.xlane.f32.xlu0 %v1440
      %v1497 = vpop.xlane.xlu0 %1496
      %1498 = vadd.xlane.f32.xlu0 %v1441
      %v1499 = vpop.xlane.xlu0 %1498
      %1500 = vadd.xlane.f32.xlu0 %v1442
      %v1501 = vpop.xlane.xlu0 %1500
      %1502 = vadd.xlane.f32.xlu0 %v1443
      %v1503 = vpop.xlane.xlu0 %1502
      %1504 = vadd.xlane.f32.xlu0 %v1444
      %v1505 = vpop.xlane.xlu0 %1504
      %1506 = vadd.xlane.f32.xlu0 %v1445
      %v1507 = vpop.xlane.xlu0 %1506
      %1508 = vadd.xlane.f32.xlu0 %v1446
      %v1509 = vpop.xlane.xlu0 %1508
      %1510 = vadd.xlane.f32.xlu0 %v1447
      %v1511 = vpop.xlane.xlu0 %1510
      %v1512 = vrcp.pop %v1449
      %v1513 = vmul.f32 %v1416, %v1512
      %v1514 = vrcp.pop %v1451
      %v1515 = vmul.f32 %v1417, %v1514
      %v1516 = vrcp.pop %v1453
      %v1517 = vmul.f32 %v1418, %v1516
      %v1518 = vrcp.pop %v1455
      %v1519 = vmul.f32 %v1419, %v1518
      %v1520 = vrcp.pop %v1457
      %v1521 = vmul.f32 %v1420, %v1520
      %v1522 = vrcp.pop %v1459
      %v1523 = vmul.f32 %v1421, %v1522
      %v1524 = vrcp.pop %v1461
      %v1525 = vmul.f32 %v1422, %v1524
      %v1526 = vrcp.pop %v1463
      %v1527 = vmul.f32 %v1423, %v1526
      %v1528 = vrcp.pop %v1465
      %v1529 = vmul.f32 %v1424, %v1528
      %v1530 = vrcp.pop %v1467
      %v1531 = vmul.f32 %v1425, %v1530
      %v1532 = vrcp.pop %v1469
      %v1533 = vmul.f32 %v1426, %v1532
      %v1534 = vrcp.pop %v1471
      %v1535 = vmul.f32 %v1427, %v1534
      %v1536 = vrcp.pop %v1473
      %v1537 = vmul.f32 %v1428, %v1536
      %v1538 = vrcp.pop %v1475
      %v1539 = vmul.f32 %v1429, %v1538
      %v1540 = vrcp.pop %v1477
      %v1541 = vmul.f32 %v1430, %v1540
      %v1542 = vrcp.pop %v1479
      %v1543 = vmul.f32 %v1431, %v1542
      %v1544 = vrcp.pop %v1481
      %v1545 = vmul.f32 %v1432, %v1544
      %v1546 = vrcp.pop %v1483
      %v1547 = vmul.f32 %v1433, %v1546
      %v1548 = vrcp.pop %v1485
      %v1549 = vmul.f32 %v1434, %v1548
      %v1550 = vrcp.pop %v1487
      %v1551 = vmul.f32 %v1435, %v1550
      %v1552 = vrcp.pop %v1489
      %v1553 = vmul.f32 %v1436, %v1552
      %v1554 = vrcp.pop %v1491
      %v1555 = vmul.f32 %v1437, %v1554
      %v1556 = vrcp.pop %v1493
      %v1557 = vmul.f32 %v1438, %v1556
      %v1558 = vrcp.pop %v1495
      %v1559 = vmul.f32 %v1439, %v1558
      %v1560 = vrcp.pop %v1497
      %v1561 = vmul.f32 %v1440, %v1560
      %v1562 = vrcp.pop %v1499
      %v1563 = vmul.f32 %v1441, %v1562
      %v1564 = vrcp.pop %v1501
      %v1565 = vmul.f32 %v1442, %v1564
      %v1566 = vrcp.pop %v1503
      %v1567 = vmul.f32 %v1443, %v1566
      %v1568 = vrcp.pop %v1505
      %v1569 = vmul.f32 %v1444, %v1568
      %v1570 = vrcp.pop %v1507
      %v1571 = vmul.f32 %v1445, %v1570
      %v1572 = vrcp.pop %v1509
      %v1573 = vmul.f32 %v1446, %v1572
      %v1574 = vrcp.pop %v1511
      %v1575 = vmul.f32 %v1447, %v1574
      %v1576 = vmul.f32 %v1513, 1.442695
      %v1577 = vpow.pop %v1576
      %v1578 = vmul.f32 %v1515, 1.442695
      %v1579 = vpow.pop %v1578
      %v1580 = vmul.f32 %v1517, 1.442695
      %v1581 = vpow.pop %v1580
      %v1582 = vmul.f32 %v1519, 1.442695
      %v1583 = vpow.pop %v1582
      %v1584 = vmul.f32 %v1521, 1.442695
      %v1585 = vpow.pop %v1584
      %v1586 = vmul.f32 %v1523, 1.442695
      %v1587 = vpow.pop %v1586
      %v1588 = vmul.f32 %v1525, 1.442695
      %v1589 = vpow.pop %v1588
      %v1590 = vmul.f32 %v1527, 1.442695
      %v1591 = vpow.pop %v1590
      %v1592 = vmul.f32 %v1529, 1.442695
      %v1593 = vpow.pop %v1592
      %v1594 = vmul.f32 %v1531, 1.442695
      %v1595 = vpow.pop %v1594
      %v1596 = vmul.f32 %v1533, 1.442695
      %v1597 = vpow.pop %v1596
      %v1598 = vmul.f32 %v1535, 1.442695
      %v1599 = vpow.pop %v1598
      %v1600 = vmul.f32 %v1537, 1.442695
      %v1601 = vpow.pop %v1600
      %v1602 = vmul.f32 %v1539, 1.442695
      %v1603 = vpow.pop %v1602
      %v1604 = vmul.f32 %v1541, 1.442695
      %v1605 = vpow.pop %v1604
      %v1606 = vmul.f32 %v1543, 1.442695
      %v1607 = vpow.pop %v1606
      %v1608 = vmul.f32 %v1545, 1.442695
      %v1609 = vpow.pop %v1608
      %v1610 = vmul.f32 %v1547, 1.442695
      %v1611 = vpow.pop %v1610
      %v1612 = vmul.f32 %v1549, 1.442695
      %v1613 = vpow.pop %v1612
      %v1614 = vmul.f32 %v1551, 1.442695
      %v1615 = vpow.pop %v1614
      %v1616 = vmul.f32 %v1553, 1.442695
      %v1617 = vpow.pop %v1616
      %v1618 = vmul.f32 %v1555, 1.442695
      %v1619 = vpow.pop %v1618
      %v1620 = vmul.f32 %v1557, 1.442695
      %v1621 = vpow.pop %v1620
      %v1622 = vmul.f32 %v1559, 1.442695
      %v1623 = vpow.pop %v1622
      %v1624 = vmul.f32 %v1561, 1.442695
      %v1625 = vpow.pop %v1624
      %v1626 = vmul.f32 %v1563, 1.442695
      %v1627 = vpow.pop %v1626
      %v1628 = vmul.f32 %v1565, 1.442695
      %v1629 = vpow.pop %v1628
      %v1630 = vmul.f32 %v1567, 1.442695
      %v1631 = vpow.pop %v1630
      %v1632 = vmul.f32 %v1569, 1.442695
      %v1633 = vpow.pop %v1632
      %v1634 = vmul.f32 %v1571, 1.442695
      %v1635 = vpow.pop %v1634
      %v1636 = vmul.f32 %v1573, 1.442695
      %v1637 = vpow.pop %v1636
      %v1638 = vmul.f32 %v1575, 1.442695
      %v1639 = vpow.pop %v1638
      %v1640 = vsel %vm1223, %v1577, 0.0
      %v1641 = vsel %vm1223, %v1579, 0.0
      %v1642 = vsel %vm1223, %v1581, 0.0
      %v1643 = vsel %vm1223, %v1583, 0.0
      %v1644 = vsel %vm1223, %v1585, 0.0
      %v1645 = vsel %vm1223, %v1587, 0.0
      %v1646 = vsel %vm1223, %v1589, 0.0
      %v1647 = vsel %vm1223, %v1591, 0.0
      %v1648 = vsel %vm1223, %v1593, 0.0
      %v1649 = vsel %vm1223, %v1595, 0.0
      %v1650 = vsel %vm1223, %v1597, 0.0
      %v1651 = vsel %vm1223, %v1599, 0.0
      %v1652 = vsel %vm1223, %v1601, 0.0
      %v1653 = vsel %vm1223, %v1603, 0.0
      %v1654 = vsel %vm1223, %v1605, 0.0
      %v1655 = vsel %vm1223, %v1607, 0.0
      %v1656 = vsel %vm1223, %v1609, 0.0
      %v1657 = vsel %vm1223, %v1611, 0.0
      %v1658 = vsel %vm1223, %v1613, 0.0
      %v1659 = vsel %vm1223, %v1615, 0.0
      %v1660 = vsel %vm1223, %v1617, 0.0
      %v1661 = vsel %vm1223, %v1619, 0.0
      %v1662 = vsel %vm1223, %v1621, 0.0
      %v1663 = vsel %vm1223, %v1623, 0.0
      %v1664 = vsel %vm1223, %v1625, 0.0
      %v1665 = vsel %vm1223, %v1627, 0.0
      %v1666 = vsel %vm1223, %v1629, 0.0
      %v1667 = vsel %vm1223, %v1631, 0.0
      %v1668 = vsel %vm1223, %v1633, 0.0
      %v1669 = vsel %vm1223, %v1635, 0.0
      %v1670 = vsel %vm1223, %v1637, 0.0
      %v1671 = vsel %vm1223, %v1639, 0.0
      %1672 = vadd.xlane.f32.xlu0 %v1640
      %v1673 = vpop.xlane.xlu0 %1672
      %1674 = vadd.xlane.f32.xlu0 %v1641
      %v1675 = vpop.xlane.xlu0 %1674
      %1676 = vadd.xlane.f32.xlu0 %v1642
      %v1677 = vpop.xlane.xlu0 %1676
      %1678 = vadd.xlane.f32.xlu0 %v1643
      %v1679 = vpop.xlane.xlu0 %1678
      %1680 = vadd.xlane.f32.xlu0 %v1644
      %v1681 = vpop.xlane.xlu0 %1680
      %1682 = vadd.xlane.f32.xlu0 %v1645
      %v1683 = vpop.xlane.xlu0 %1682
      %1684 = vadd.xlane.f32.xlu0 %v1646
      %v1685 = vpop.xlane.xlu0 %1684
      %1686 = vadd.xlane.f32.xlu0 %v1647
      %v1687 = vpop.xlane.xlu0 %1686
      %1688 = vadd.xlane.f32.xlu0 %v1648
      %v1689 = vpop.xlane.xlu0 %1688
      %1690 = vadd.xlane.f32.xlu0 %v1649
      %v1691 = vpop.xlane.xlu0 %1690
      %1692 = vadd.xlane.f32.xlu0 %v1650
      %v1693 = vpop.xlane.xlu0 %1692
      %1694 = vadd.xlane.f32.xlu0 %v1651
      %v1695 = vpop.xlane.xlu0 %1694
      %1696 = vadd.xlane.f32.xlu0 %v1652
      %v1697 = vpop.xlane.xlu0 %1696
      %1698 = vadd.xlane.f32.xlu0 %v1653
      %v1699 = vpop.xlane.xlu0 %1698
      %1700 = vadd.xlane.f32.xlu0 %v1654
      %v1701 = vpop.xlane.xlu0 %1700
      %1702 = vadd.xlane.f32.xlu0 %v1655
      %v1703 = vpop.xlane.xlu0 %1702
      %1704 = vadd.xlane.f32.xlu0 %v1656
      %v1705 = vpop.xlane.xlu0 %1704
      %1706 = vadd.xlane.f32.xlu0 %v1657
      %v1707 = vpop.xlane.xlu0 %1706
      %1708 = vadd.xlane.f32.xlu0 %v1658
      %v1709 = vpop.xlane.xlu0 %1708
      %1710 = vadd.xlane.f32.xlu0 %v1659
      %v1711 = vpop.xlane.xlu0 %1710
      %1712 = vadd.xlane.f32.xlu0 %v1660
      %v1713 = vpop.xlane.xlu0 %1712
      %1714 = vadd.xlane.f32.xlu0 %v1661
      %v1715 = vpop.xlane.xlu0 %1714
      %1716 = vadd.xlane.f32.xlu0 %v1662
      %v1717 = vpop.xlane.xlu0 %1716
      %1718 = vadd.xlane.f32.xlu0 %v1663
      %v1719 = vpop.xlane.xlu0 %1718
      %1720 = vadd.xlane.f32.xlu0 %v1664
      %v1721 = vpop.xlane.xlu0 %1720
      %1722 = vadd.xlane.f32.xlu0 %v1665
      %v1723 = vpop.xlane.xlu0 %1722
      %1724 = vadd.xlane.f32.xlu0 %v1666
      %v1725 = vpop.xlane.xlu0 %1724
      %1726 = vadd.xlane.f32.xlu0 %v1667
      %v1727 = vpop.xlane.xlu0 %1726
      %1728 = vadd.xlane.f32.xlu0 %v1668
      %v1729 = vpop.xlane.xlu0 %1728
      %1730 = vadd.xlane.f32.xlu0 %v1669
      %v1731 = vpop.xlane.xlu0 %1730
      %1732 = vadd.xlane.f32.xlu0 %v1670
      %v1733 = vpop.xlane.xlu0 %1732
      %1734 = vadd.xlane.f32.xlu0 %v1671
      %v1735 = vpop.xlane.xlu0 %1734
      %v1736 = vlog2.pop %v1673
      %v1737 = vmul.f32 %v1736, 0.6931472
      %v1738 = vlog2.pop %v1675
      %v1739 = vmul.f32 %v1738, 0.6931472
      %v1740 = vlog2.pop %v1677
      %v1741 = vmul.f32 %v1740, 0.6931472
      %v1742 = vlog2.pop %v1679
      %v1743 = vmul.f32 %v1742, 0.6931472
      %v1744 = vlog2.pop %v1681
      %v1745 = vmul.f32 %v1744, 0.6931472
      %v1746 = vlog2.pop %v1683
      %v1747 = vmul.f32 %v1746, 0.6931472
      %v1748 = vlog2.pop %v1685
      %v1749 = vmul.f32 %v1748, 0.6931472
      %v1750 = vlog2.pop %v1687
      %v1751 = vmul.f32 %v1750, 0.6931472
      %v1752 = vlog2.pop %v1689
      %v1753 = vmul.f32 %v1752, 0.6931472
      %v1754 = vlog2.pop %v1691
      %v1755 = vmul.f32 %v1754, 0.6931472
      %v1756 = vlog2.pop %v1693
      %v1757 = vmul.f32 %v1756, 0.6931472
      %v1758 = vlog2.pop %v1695
      %v1759 = vmul.f32 %v1758, 0.6931472
      %v1760 = vlog2.pop %v1697
      %v1761 = vmul.f32 %v1760, 0.6931472
      %v1762 = vlog2.pop %v1699
      %v1763 = vmul.f32 %v1762, 0.6931472
      %v1764 = vlog2.pop %v1701
      %v1765 = vmul.f32 %v1764, 0.6931472
      %v1766 = vlog2.pop %v1703
      %v1767 = vmul.f32 %v1766, 0.6931472
      %v1768 = vlog2.pop %v1705
      %v1769 = vmul.f32 %v1768, 0.6931472
      %v1770 = vlog2.pop %v1707
      %v1771 = vmul.f32 %v1770, 0.6931472
      %v1772 = vlog2.pop %v1709
      %v1773 = vmul.f32 %v1772, 0.6931472
      %v1774 = vlog2.pop %v1711
      %v1775 = vmul.f32 %v1774, 0.6931472
      %v1776 = vlog2.pop %v1713
      %v1777 = vmul.f32 %v1776, 0.6931472
      %v1778 = vlog2.pop %v1715
      %v1779 = vmul.f32 %v1778, 0.6931472
      %v1780 = vlog2.pop %v1717
      %v1781 = vmul.f32 %v1780, 0.6931472
      %v1782 = vlog2.pop %v1719
      %v1783 = vmul.f32 %v1782, 0.6931472
      %v1784 = vlog2.pop %v1721
      %v1785 = vmul.f32 %v1784, 0.6931472
      %v1786 = vlog2.pop %v1723
      %v1787 = vmul.f32 %v1786, 0.6931472
      %v1788 = vlog2.pop %v1725
      %v1789 = vmul.f32 %v1788, 0.6931472
      %v1790 = vlog2.pop %v1727
      %v1791 = vmul.f32 %v1790, 0.6931472
      %v1792 = vlog2.pop %v1729
      %v1793 = vmul.f32 %v1792, 0.6931472
      %v1794 = vlog2.pop %v1731
      %v1795 = vmul.f32 %v1794, 0.6931472
      %v1796 = vlog2.pop %v1733
      %v1797 = vmul.f32 %v1796, 0.6931472
      %v1798 = vlog2.pop %v1735
      %v1799 = vmul.f32 %v1798, 0.6931472
      %v1800 = vadd.f32 %v1513, %v202
      %v1801 = vadd.f32 %v1515, %v203
      %v1802 = vadd.f32 %v1517, %v204
      %v1803 = vadd.f32 %v1519, %v205
      %v1804 = vadd.f32 %v1521, %v206
      %v1805 = vadd.f32 %v1523, %v207
      %v1806 = vadd.f32 %v1525, %v208
      %v1807 = vadd.f32 %v1527, %v209
      %v1808 = vadd.f32 %v1529, %v210
      %v1809 = vadd.f32 %v1531, %v211
      %v1810 = vadd.f32 %v1533, %v212
      %v1811 = vadd.f32 %v1535, %v213
      %v1812 = vadd.f32 %v1537, %v214
      %v1813 = vadd.f32 %v1539, %v215
      %v1814 = vadd.f32 %v1541, %v216
      %v1815 = vadd.f32 %v1543, %v217
      %v1816 = vadd.f32 %v1545, %v218
      %v1817 = vadd.f32 %v1547, %v219
      %v1818 = vadd.f32 %v1549, %v220
      %v1819 = vadd.f32 %v1551, %v221
      %v1820 = vadd.f32 %v1553, %v222
      %v1821 = vadd.f32 %v1555, %v223
      %v1822 = vadd.f32 %v1557, %v224
      %v1823 = vadd.f32 %v1559, %v225
      %v1824 = vadd.f32 %v1561, %v226
      %v1825 = vadd.f32 %v1563, %v227
      %v1826 = vadd.f32 %v1565, %v228
      %v1827 = vadd.f32 %v1567, %v229
      %v1828 = vadd.f32 %v1569, %v230
      %v1829 = vadd.f32 %v1571, %v231
      %v1830 = vadd.f32 %v1573, %v232
      %v1831 = vadd.f32 %v1575, %v233
      %v1832 = vsel %vm1223, %v1800, -1e+30
      %v1833 = vsel %vm1223, %v1801, -1e+30
      %v1834 = vsel %vm1223, %v1802, -1e+30
      %v1835 = vsel %vm1223, %v1803, -1e+30
      %v1836 = vsel %vm1223, %v1804, -1e+30
      %v1837 = vsel %vm1223, %v1805, -1e+30
      %v1838 = vsel %vm1223, %v1806, -1e+30
      %v1839 = vsel %vm1223, %v1807, -1e+30
      %v1840 = vsel %vm1223, %v1808, -1e+30
      %v1841 = vsel %vm1223, %v1809, -1e+30
      %v1842 = vsel %vm1223, %v1810, -1e+30
      %v1843 = vsel %vm1223, %v1811, -1e+30
      %v1844 = vsel %vm1223, %v1812, -1e+30
      %v1845 = vsel %vm1223, %v1813, -1e+30
      %v1846 = vsel %vm1223, %v1814, -1e+30
      %v1847 = vsel %vm1223, %v1815, -1e+30
      %v1848 = vsel %vm1223, %v1816, -1e+30
      %v1849 = vsel %vm1223, %v1817, -1e+30
      %v1850 = vsel %vm1223, %v1818, -1e+30
      %v1851 = vsel %vm1223, %v1819, -1e+30
      %v1852 = vsel %vm1223, %v1820, -1e+30
      %v1853 = vsel %vm1223, %v1821, -1e+30
      %v1854 = vsel %vm1223, %v1822, -1e+30
      %v1855 = vsel %vm1223, %v1823, -1e+30
      %v1856 = vsel %vm1223, %v1824, -1e+30
      %v1857 = vsel %vm1223, %v1825, -1e+30
      %v1858 = vsel %vm1223, %v1826, -1e+30
      %v1859 = vsel %vm1223, %v1827, -1e+30
      %v1860 = vsel %vm1223, %v1828, -1e+30
      %v1861 = vsel %vm1223, %v1829, -1e+30
      %v1862 = vsel %vm1223, %v1830, -1e+30
      %v1863 = vsel %vm1223, %v1831, -1e+30
      %vm1864 = vcmask 64512
      %v1865 = vsel %vm1864, %v1832, -inf
      %1866 = vmax.xlane.f32.xlu0 %v1865
      %v1867 = vpop.xlane.xlu0 %1866
      %v1868 = vsel %vm1864, %v1833, -inf
      %1869 = vmax.xlane.f32.xlu0 %v1868
      %v1870 = vpop.xlane.xlu0 %1869
      %v1871 = vsel %vm1864, %v1834, -inf
      %1872 = vmax.xlane.f32.xlu0 %v1871
      %v1873 = vpop.xlane.xlu0 %1872
      %v1874 = vsel %vm1864, %v1835, -inf
      %1875 = vmax.xlane.f32.xlu0 %v1874
      %v1876 = vpop.xlane.xlu0 %1875
      %v1877 = vsel %vm1864, %v1836, -inf
      %1878 = vmax.xlane.f32.xlu0 %v1877
      %v1879 = vpop.xlane.xlu0 %1878
      %v1880 = vsel %vm1864, %v1837, -inf
      %1881 = vmax.xlane.f32.xlu0 %v1880
      %v1882 = vpop.xlane.xlu0 %1881
      %v1883 = vsel %vm1864, %v1838, -inf
      %1884 = vmax.xlane.f32.xlu0 %v1883
      %v1885 = vpop.xlane.xlu0 %1884
      %v1886 = vsel %vm1864, %v1839, -inf
      %1887 = vmax.xlane.f32.xlu0 %v1886
      %v1888 = vpop.xlane.xlu0 %1887
      %v1889 = vsel %vm1864, %v1840, -inf
      %1890 = vmax.xlane.f32.xlu0 %v1889
      %v1891 = vpop.xlane.xlu0 %1890
      %v1892 = vsel %vm1864, %v1841, -inf
      %1893 = vmax.xlane.f32.xlu0 %v1892
      %v1894 = vpop.xlane.xlu0 %1893
      %v1895 = vsel %vm1864, %v1842, -inf
      %1896 = vmax.xlane.f32.xlu0 %v1895
      %v1897 = vpop.xlane.xlu0 %1896
      %v1898 = vsel %vm1864, %v1843, -inf
      %1899 = vmax.xlane.f32.xlu0 %v1898
      %v1900 = vpop.xlane.xlu0 %1899
      %v1901 = vsel %vm1864, %v1844, -inf
      %1902 = vmax.xlane.f32.xlu0 %v1901
      %v1903 = vpop.xlane.xlu0 %1902
      %v1904 = vsel %vm1864, %v1845, -inf
      %1905 = vmax.xlane.f32.xlu0 %v1904
      %v1906 = vpop.xlane.xlu0 %1905
      %v1907 = vsel %vm1864, %v1846, -inf
      %1908 = vmax.xlane.f32.xlu0 %v1907
      %v1909 = vpop.xlane.xlu0 %1908
      %v1910 = vsel %vm1864, %v1847, -inf
      %1911 = vmax.xlane.f32.xlu0 %v1910
      %v1912 = vpop.xlane.xlu0 %1911
      %v1913 = vsel %vm1864, %v1848, -inf
      %1914 = vmax.xlane.f32.xlu0 %v1913
      %v1915 = vpop.xlane.xlu0 %1914
      %v1916 = vsel %vm1864, %v1849, -inf
      %1917 = vmax.xlane.f32.xlu0 %v1916
      %v1918 = vpop.xlane.xlu0 %1917
      %v1919 = vsel %vm1864, %v1850, -inf
      %1920 = vmax.xlane.f32.xlu0 %v1919
      %v1921 = vpop.xlane.xlu0 %1920
      %v1922 = vsel %vm1864, %v1851, -inf
      %1923 = vmax.xlane.f32.xlu0 %v1922
      %v1924 = vpop.xlane.xlu0 %1923
      %v1925 = vsel %vm1864, %v1852, -inf
      %1926 = vmax.xlane.f32.xlu0 %v1925
      %v1927 = vpop.xlane.xlu0 %1926
      %v1928 = vsel %vm1864, %v1853, -inf
      %1929 = vmax.xlane.f32.xlu0 %v1928
      %v1930 = vpop.xlane.xlu0 %1929
      %v1931 = vsel %vm1864, %v1854, -inf
      %1932 = vmax.xlane.f32.xlu0 %v1931
      %v1933 = vpop.xlane.xlu0 %1932
      %v1934 = vsel %vm1864, %v1855, -inf
      %1935 = vmax.xlane.f32.xlu0 %v1934
      %v1936 = vpop.xlane.xlu0 %1935
      %v1937 = vsel %vm1864, %v1856, -inf
      %1938 = vmax.xlane.f32.xlu0 %v1937
      %v1939 = vpop.xlane.xlu0 %1938
      %v1940 = vsel %vm1864, %v1857, -inf
      %1941 = vmax.xlane.f32.xlu0 %v1940
      %v1942 = vpop.xlane.xlu0 %1941
      %v1943 = vsel %vm1864, %v1858, -inf
      %1944 = vmax.xlane.f32.xlu0 %v1943
      %v1945 = vpop.xlane.xlu0 %1944
      %v1946 = vsel %vm1864, %v1859, -inf
      %1947 = vmax.xlane.f32.xlu0 %v1946
      %v1948 = vpop.xlane.xlu0 %1947
      %v1949 = vsel %vm1864, %v1860, -inf
      %1950 = vmax.xlane.f32.xlu0 %v1949
      %v1951 = vpop.xlane.xlu0 %1950
      %v1952 = vsel %vm1864, %v1861, -inf
      %1953 = vmax.xlane.f32.xlu0 %v1952
      %v1954 = vpop.xlane.xlu0 %1953
      %v1955 = vsel %vm1864, %v1862, -inf
      %1956 = vmax.xlane.f32.xlu0 %v1955
      %v1957 = vpop.xlane.xlu0 %1956
      %v1958 = vsel %vm1864, %v1863, -inf
      %1959 = vmax.xlane.f32.xlu0 %v1958
      %v1960 = vpop.xlane.xlu0 %1959
      %vm1961 = vcmp.eq.f32.partialorder %v1832, %v1867
      %vm1962 = vcmp.eq.f32.partialorder %v1833, %v1870
      %vm1963 = vcmp.eq.f32.partialorder %v1834, %v1873
      %vm1964 = vcmp.eq.f32.partialorder %v1835, %v1876
      %vm1965 = vcmp.eq.f32.partialorder %v1836, %v1879
      %vm1966 = vcmp.eq.f32.partialorder %v1837, %v1882
      %vm1967 = vcmp.eq.f32.partialorder %v1838, %v1885
      %vm1968 = vcmp.eq.f32.partialorder %v1839, %v1888
      %vm1969 = vcmp.eq.f32.partialorder %v1840, %v1891
      %vm1970 = vcmp.eq.f32.partialorder %v1841, %v1894
      %vm1971 = vcmp.eq.f32.partialorder %v1842, %v1897
      %vm1972 = vcmp.eq.f32.partialorder %v1843, %v1900
      %vm1973 = vcmp.eq.f32.partialorder %v1844, %v1903
      %vm1974 = vcmp.eq.f32.partialorder %v1845, %v1906
      %vm1975 = vcmp.eq.f32.partialorder %v1846, %v1909
      %vm1976 = vcmp.eq.f32.partialorder %v1847, %v1912
      %vm1977 = vcmp.eq.f32.partialorder %v1848, %v1915
      %vm1978 = vcmp.eq.f32.partialorder %v1849, %v1918
      %vm1979 = vcmp.eq.f32.partialorder %v1850, %v1921
      %vm1980 = vcmp.eq.f32.partialorder %v1851, %v1924
      %vm1981 = vcmp.eq.f32.partialorder %v1852, %v1927
      %vm1982 = vcmp.eq.f32.partialorder %v1853, %v1930
      %vm1983 = vcmp.eq.f32.partialorder %v1854, %v1933
      %vm1984 = vcmp.eq.f32.partialorder %v1855, %v1936
      %vm1985 = vcmp.eq.f32.partialorder %v1856, %v1939
      %vm1986 = vcmp.eq.f32.partialorder %v1857, %v1942
      %vm1987 = vcmp.eq.f32.partialorder %v1858, %v1945
      %vm1988 = vcmp.eq.f32.partialorder %v1859, %v1948
      %vm1989 = vcmp.eq.f32.partialorder %v1860, %v1951
      %vm1990 = vcmp.eq.f32.partialorder %v1861, %v1954
      %vm1991 = vcmp.eq.f32.partialorder %v1862, %v1957
      %vm1992 = vcmp.eq.f32.partialorder %v1863, %v1960
      %vm1993 = vmand %vm1961, %vm1223
      %vm1994 = vmand %vm1962, %vm1223
      %vm1995 = vmand %vm1963, %vm1223
      %vm1996 = vmand %vm1964, %vm1223
      %vm1997 = vmand %vm1965, %vm1223
      %vm1998 = vmand %vm1966, %vm1223
      %vm1999 = vmand %vm1967, %vm1223
      %vm2000 = vmand %vm1968, %vm1223
      %vm2001 = vmand %vm1969, %vm1223
      %vm2002 = vmand %vm1970, %vm1223
      %vm2003 = vmand %vm1971, %vm1223
      %vm2004 = vmand %vm1972, %vm1223
      %vm2005 = vmand %vm1973, %vm1223
      %vm2006 = vmand %vm1974, %vm1223
      %vm2007 = vmand %vm1975, %vm1223
      %vm2008 = vmand %vm1976, %vm1223
      %vm2009 = vmand %vm1977, %vm1223
      %vm2010 = vmand %vm1978, %vm1223
      %vm2011 = vmand %vm1979, %vm1223
      %vm2012 = vmand %vm1980, %vm1223
      %vm2013 = vmand %vm1981, %vm1223
      %vm2014 = vmand %vm1982, %vm1223
      %vm2015 = vmand %vm1983, %vm1223
      %vm2016 = vmand %vm1984, %vm1223
      %vm2017 = vmand %vm1985, %vm1223
      %vm2018 = vmand %vm1986, %vm1223
      %vm2019 = vmand %vm1987, %vm1223
      %vm2020 = vmand %vm1988, %vm1223
      %vm2021 = vmand %vm1989, %vm1223
      %vm2022 = vmand %vm1990, %vm1223
      %vm2023 = vmand %vm1991, %vm1223
      %vm2024 = vmand %vm1992, %vm1223
      %v2025 = vcvt.s32.f32 %v1222
      %v2026 = vsel %vm1993, %v2025, 8.0
      %v2027 = vsel %vm1994, %v2025, 8.0
      %v2028 = vsel %vm1995, %v2025, 8.0
      %v2029 = vsel %vm1996, %v2025, 8.0
      %v2030 = vsel %vm1997, %v2025, 8.0
      %v2031 = vsel %vm1998, %v2025, 8.0
      %v2032 = vsel %vm1999, %v2025, 8.0
      %v2033 = vsel %vm2000, %v2025, 8.0
      %v2034 = vsel %vm2001, %v2025, 8.0
      %v2035 = vsel %vm2002, %v2025, 8.0
      %v2036 = vsel %vm2003, %v2025, 8.0
      %v2037 = vsel %vm2004, %v2025, 8.0
      %v2038 = vsel %vm2005, %v2025, 8.0
      %v2039 = vsel %vm2006, %v2025, 8.0
      %v2040 = vsel %vm2007, %v2025, 8.0
      %v2041 = vsel %vm2008, %v2025, 8.0
      %v2042 = vsel %vm2009, %v2025, 8.0
      %v2043 = vsel %vm2010, %v2025, 8.0
      %v2044 = vsel %vm2011, %v2025, 8.0
      %v2045 = vsel %vm2012, %v2025, 8.0
      %v2046 = vsel %vm2013, %v2025, 8.0
      %v2047 = vsel %vm2014, %v2025, 8.0
      %v2048 = vsel %vm2015, %v2025, 8.0
      %v2049 = vsel %vm2016, %v2025, 8.0
      %v2050 = vsel %vm2017, %v2025, 8.0
      %v2051 = vsel %vm2018, %v2025, 8.0
      %v2052 = vsel %vm2019, %v2025, 8.0
      %v2053 = vsel %vm2020, %v2025, 8.0
      %v2054 = vsel %vm2021, %v2025, 8.0
      %v2055 = vsel %vm2022, %v2025, 8.0
      %v2056 = vsel %vm2023, %v2025, 8.0
      %v2057 = vsel %vm2024, %v2025, 8.0
      %v2058 = vsel %vm1864, %v2026, inf
      %2059 = vmin.xlane.f32.xlu0 %v2058
      %v2060 = vpop.xlane.xlu0 %2059
      %v2061 = vsel %vm1864, %v2027, inf
      %2062 = vmin.xlane.f32.xlu0 %v2061
      %v2063 = vpop.xlane.xlu0 %2062
      %v2064 = vsel %vm1864, %v2028, inf
      %2065 = vmin.xlane.f32.xlu0 %v2064
      %v2066 = vpop.xlane.xlu0 %2065
      %v2067 = vsel %vm1864, %v2029, inf
      %2068 = vmin.xlane.f32.xlu0 %v2067
      %v2069 = vpop.xlane.xlu0 %2068
      %v2070 = vsel %vm1864, %v2030, inf
      %2071 = vmin.xlane.f32.xlu0 %v2070
      %v2072 = vpop.xlane.xlu0 %2071
      %v2073 = vsel %vm1864, %v2031, inf
      %2074 = vmin.xlane.f32.xlu0 %v2073
      %v2075 = vpop.xlane.xlu0 %2074
      %v2076 = vsel %vm1864, %v2032, inf
      %2077 = vmin.xlane.f32.xlu0 %v2076
      %v2078 = vpop.xlane.xlu0 %2077
      %v2079 = vsel %vm1864, %v2033, inf
      %2080 = vmin.xlane.f32.xlu0 %v2079
      %v2081 = vpop.xlane.xlu0 %2080
      %v2082 = vsel %vm1864, %v2034, inf
      %2083 = vmin.xlane.f32.xlu0 %v2082
      %v2084 = vpop.xlane.xlu0 %2083
      %v2085 = vsel %vm1864, %v2035, inf
      %2086 = vmin.xlane.f32.xlu0 %v2085
      %v2087 = vpop.xlane.xlu0 %2086
      %v2088 = vsel %vm1864, %v2036, inf
      %2089 = vmin.xlane.f32.xlu0 %v2088
      %v2090 = vpop.xlane.xlu0 %2089
      %v2091 = vsel %vm1864, %v2037, inf
      %2092 = vmin.xlane.f32.xlu0 %v2091
      %v2093 = vpop.xlane.xlu0 %2092
      %v2094 = vsel %vm1864, %v2038, inf
      %2095 = vmin.xlane.f32.xlu0 %v2094
      %v2096 = vpop.xlane.xlu0 %2095
      %v2097 = vsel %vm1864, %v2039, inf
      %2098 = vmin.xlane.f32.xlu0 %v2097
      %v2099 = vpop.xlane.xlu0 %2098
      %v2100 = vsel %vm1864, %v2040, inf
      %2101 = vmin.xlane.f32.xlu0 %v2100
      %v2102 = vpop.xlane.xlu0 %2101
      %v2103 = vsel %vm1864, %v2041, inf
      %2104 = vmin.xlane.f32.xlu0 %v2103
      %v2105 = vpop.xlane.xlu0 %2104
      %v2106 = vsel %vm1864, %v2042, inf
      %2107 = vmin.xlane.f32.xlu0 %v2106
      %v2108 = vpop.xlane.xlu0 %2107
      %v2109 = vsel %vm1864, %v2043, inf
      %2110 = vmin.xlane.f32.xlu0 %v2109
      %v2111 = vpop.xlane.xlu0 %2110
      %v2112 = vsel %vm1864, %v2044, inf
      %2113 = vmin.xlane.f32.xlu0 %v2112
      %v2114 = vpop.xlane.xlu0 %2113
      %v2115 = vsel %vm1864, %v2045, inf
      %2116 = vmin.xlane.f32.xlu0 %v2115
      %v2117 = vpop.xlane.xlu0 %2116
      %v2118 = vsel %vm1864, %v2046, inf
      %2119 = vmin.xlane.f32.xlu0 %v2118
      %v2120 = vpop.xlane.xlu0 %2119
      %v2121 = vsel %vm1864, %v2047, inf
      %2122 = vmin.xlane.f32.xlu0 %v2121
      %v2123 = vpop.xlane.xlu0 %2122
      %v2124 = vsel %vm1864, %v2048, inf
      %2125 = vmin.xlane.f32.xlu0 %v2124
      %v2126 = vpop.xlane.xlu0 %2125
      %v2127 = vsel %vm1864, %v2049, inf
      %2128 = vmin.xlane.f32.xlu0 %v2127
      %v2129 = vpop.xlane.xlu0 %2128
      %v2130 = vsel %vm1864, %v2050, inf
      %2131 = vmin.xlane.f32.xlu0 %v2130
      %v2132 = vpop.xlane.xlu0 %2131
      %v2133 = vsel %vm1864, %v2051, inf
      %2134 = vmin.xlane.f32.xlu0 %v2133
      %v2135 = vpop.xlane.xlu0 %2134
      %v2136 = vsel %vm1864, %v2052, inf
      %2137 = vmin.xlane.f32.xlu0 %v2136
      %v2138 = vpop.xlane.xlu0 %2137
      %v2139 = vsel %vm1864, %v2053, inf
      %2140 = vmin.xlane.f32.xlu0 %v2139
      %v2141 = vpop.xlane.xlu0 %2140
      %v2142 = vsel %vm1864, %v2054, inf
      %2143 = vmin.xlane.f32.xlu0 %v2142
      %v2144 = vpop.xlane.xlu0 %2143
      %v2145 = vsel %vm1864, %v2055, inf
      %2146 = vmin.xlane.f32.xlu0 %v2145
      %v2147 = vpop.xlane.xlu0 %2146
      %v2148 = vsel %vm1864, %v2056, inf
      %2149 = vmin.xlane.f32.xlu0 %v2148
      %v2150 = vpop.xlane.xlu0 %2149
      %v2151 = vsel %vm1864, %v2057, inf
      %2152 = vmin.xlane.f32.xlu0 %v2151
      %v2153 = vpop.xlane.xlu0 %2152
      %v2154 = vmin.f32 %v2060, 3.0
      %v2155 = vmin.f32 %v2063, 3.0
      %v2156 = vmin.f32 %v2066, 3.0
      %v2157 = vmin.f32 %v2069, 3.0
      %v2158 = vmin.f32 %v2072, 3.0
      %v2159 = vmin.f32 %v2075, 3.0
      %v2160 = vmin.f32 %v2078, 3.0
      %v2161 = vmin.f32 %v2081, 3.0
      %v2162 = vmin.f32 %v2084, 3.0
      %v2163 = vmin.f32 %v2087, 3.0
      %v2164 = vmin.f32 %v2090, 3.0
      %v2165 = vmin.f32 %v2093, 3.0
      %v2166 = vmin.f32 %v2096, 3.0
      %v2167 = vmin.f32 %v2099, 3.0
      %v2168 = vmin.f32 %v2102, 3.0
      %v2169 = vmin.f32 %v2105, 3.0
      %v2170 = vmin.f32 %v2108, 3.0
      %v2171 = vmin.f32 %v2111, 3.0
      %v2172 = vmin.f32 %v2114, 3.0
      %v2173 = vmin.f32 %v2117, 3.0
      %v2174 = vmin.f32 %v2120, 3.0
      %v2175 = vmin.f32 %v2123, 3.0
      %v2176 = vmin.f32 %v2126, 3.0
      %v2177 = vmin.f32 %v2129, 3.0
      %v2178 = vmin.f32 %v2132, 3.0
      %v2179 = vmin.f32 %v2135, 3.0
      %v2180 = vmin.f32 %v2138, 3.0
      %v2181 = vmin.f32 %v2141, 3.0
      %v2182 = vmin.f32 %v2144, 3.0
      %v2183 = vmin.f32 %v2147, 3.0
      %v2184 = vmin.f32 %v2150, 3.0
      %v2185 = vmin.f32 %v2153, 3.0
      %v2186 = vcvt.f32.s32.to.zero.pseudo %v2154
      %v2187 = vcvt.f32.s32.to.zero.pseudo %v2155
      %v2188 = vcvt.f32.s32.to.zero.pseudo %v2156
      %v2189 = vcvt.f32.s32.to.zero.pseudo %v2157
      %v2190 = vcvt.f32.s32.to.zero.pseudo %v2158
      %v2191 = vcvt.f32.s32.to.zero.pseudo %v2159
      %v2192 = vcvt.f32.s32.to.zero.pseudo %v2160
      %v2193 = vcvt.f32.s32.to.zero.pseudo %v2161
      %v2194 = vcvt.f32.s32.to.zero.pseudo %v2162
      %v2195 = vcvt.f32.s32.to.zero.pseudo %v2163
      %v2196 = vcvt.f32.s32.to.zero.pseudo %v2164
      %v2197 = vcvt.f32.s32.to.zero.pseudo %v2165
      %v2198 = vcvt.f32.s32.to.zero.pseudo %v2166
      %v2199 = vcvt.f32.s32.to.zero.pseudo %v2167
      %v2200 = vcvt.f32.s32.to.zero.pseudo %v2168
      %v2201 = vcvt.f32.s32.to.zero.pseudo %v2169
      %v2202 = vcvt.f32.s32.to.zero.pseudo %v2170
      %v2203 = vcvt.f32.s32.to.zero.pseudo %v2171
      %v2204 = vcvt.f32.s32.to.zero.pseudo %v2172
      %v2205 = vcvt.f32.s32.to.zero.pseudo %v2173
      %v2206 = vcvt.f32.s32.to.zero.pseudo %v2174
      %v2207 = vcvt.f32.s32.to.zero.pseudo %v2175
      %v2208 = vcvt.f32.s32.to.zero.pseudo %v2176
      %v2209 = vcvt.f32.s32.to.zero.pseudo %v2177
      %v2210 = vcvt.f32.s32.to.zero.pseudo %v2178
      %v2211 = vcvt.f32.s32.to.zero.pseudo %v2179
      %v2212 = vcvt.f32.s32.to.zero.pseudo %v2180
      %v2213 = vcvt.f32.s32.to.zero.pseudo %v2181
      %v2214 = vcvt.f32.s32.to.zero.pseudo %v2182
      %v2215 = vcvt.f32.s32.to.zero.pseudo %v2183
      %v2216 = vcvt.f32.s32.to.zero.pseudo %v2184
      %v2217 = vcvt.f32.s32.to.zero.pseudo %v2185
      %vm2218 = vcmp.eq.s32.totalorder %v1222, %v2186
      %vm2219 = vcmp.eq.s32.totalorder %v1222, %v2187
      %vm2220 = vcmp.eq.s32.totalorder %v1222, %v2188
      %vm2221 = vcmp.eq.s32.totalorder %v1222, %v2189
      %vm2222 = vcmp.eq.s32.totalorder %v1222, %v2190
      %vm2223 = vcmp.eq.s32.totalorder %v1222, %v2191
      %vm2224 = vcmp.eq.s32.totalorder %v1222, %v2192
      %vm2225 = vcmp.eq.s32.totalorder %v1222, %v2193
      %vm2226 = vcmp.eq.s32.totalorder %v1222, %v2194
      %vm2227 = vcmp.eq.s32.totalorder %v1222, %v2195
      %vm2228 = vcmp.eq.s32.totalorder %v1222, %v2196
      %vm2229 = vcmp.eq.s32.totalorder %v1222, %v2197
      %vm2230 = vcmp.eq.s32.totalorder %v1222, %v2198
      %vm2231 = vcmp.eq.s32.totalorder %v1222, %v2199
      %vm2232 = vcmp.eq.s32.totalorder %v1222, %v2200
      %vm2233 = vcmp.eq.s32.totalorder %v1222, %v2201
      %vm2234 = vcmp.eq.s32.totalorder %v1222, %v2202
      %vm2235 = vcmp.eq.s32.totalorder %v1222, %v2203
      %vm2236 = vcmp.eq.s32.totalorder %v1222, %v2204
      %vm2237 = vcmp.eq.s32.totalorder %v1222, %v2205
      %vm2238 = vcmp.eq.s32.totalorder %v1222, %v2206
      %vm2239 = vcmp.eq.s32.totalorder %v1222, %v2207
      %vm2240 = vcmp.eq.s32.totalorder %v1222, %v2208
      %vm2241 = vcmp.eq.s32.totalorder %v1222, %v2209
      %vm2242 = vcmp.eq.s32.totalorder %v1222, %v2210
      %vm2243 = vcmp.eq.s32.totalorder %v1222, %v2211
      %vm2244 = vcmp.eq.s32.totalorder %v1222, %v2212
      %vm2245 = vcmp.eq.s32.totalorder %v1222, %v2213
      %vm2246 = vcmp.eq.s32.totalorder %v1222, %v2214
      %vm2247 = vcmp.eq.s32.totalorder %v1222, %v2215
      %vm2248 = vcmp.eq.s32.totalorder %v1222, %v2216
      %vm2249 = vcmp.eq.s32.totalorder %v1222, %v2217
      %v2250 = vsel %vm2218, %v1513, 0.0
      %v2251 = vsel %vm2219, %v1515, 0.0
      %v2252 = vsel %vm2220, %v1517, 0.0
      %v2253 = vsel %vm2221, %v1519, 0.0
      %v2254 = vsel %vm2222, %v1521, 0.0
      %v2255 = vsel %vm2223, %v1523, 0.0
      %v2256 = vsel %vm2224, %v1525, 0.0
      %v2257 = vsel %vm2225, %v1527, 0.0
      %v2258 = vsel %vm2226, %v1529, 0.0
      %v2259 = vsel %vm2227, %v1531, 0.0
      %v2260 = vsel %vm2228, %v1533, 0.0
      %v2261 = vsel %vm2229, %v1535, 0.0
      %v2262 = vsel %vm2230, %v1537, 0.0
      %v2263 = vsel %vm2231, %v1539, 0.0
      %v2264 = vsel %vm2232, %v1541, 0.0
      %v2265 = vsel %vm2233, %v1543, 0.0
      %v2266 = vsel %vm2234, %v1545, 0.0
      %v2267 = vsel %vm2235, %v1547, 0.0
      %v2268 = vsel %vm2236, %v1549, 0.0
      %v2269 = vsel %vm2237, %v1551, 0.0
      %v2270 = vsel %vm2238, %v1553, 0.0
      %v2271 = vsel %vm2239, %v1555, 0.0
      %v2272 = vsel %vm2240, %v1557, 0.0
      %v2273 = vsel %vm2241, %v1559, 0.0
      %v2274 = vsel %vm2242, %v1561, 0.0
      %v2275 = vsel %vm2243, %v1563, 0.0
      %v2276 = vsel %vm2244, %v1565, 0.0
      %v2277 = vsel %vm2245, %v1567, 0.0
      %v2278 = vsel %vm2246, %v1569, 0.0
      %v2279 = vsel %vm2247, %v1571, 0.0
      %v2280 = vsel %vm2248, %v1573, 0.0
      %v2281 = vsel %vm2249, %v1575, 0.0
      %v2282 = vsel %vm1864, %v2250, 0.0
      %2283 = vadd.xlane.f32.xlu0 %v2282
      %v2284 = vpop.xlane.xlu0 %2283
      %v2285 = vsel %vm1864, %v2251, 0.0
      %2286 = vadd.xlane.f32.xlu0 %v2285
      %v2287 = vpop.xlane.xlu0 %2286
      %v2288 = vsel %vm1864, %v2252, 0.0
      %2289 = vadd.xlane.f32.xlu0 %v2288
      %v2290 = vpop.xlane.xlu0 %2289
      %v2291 = vsel %vm1864, %v2253, 0.0
      %2292 = vadd.xlane.f32.xlu0 %v2291
      %v2293 = vpop.xlane.xlu0 %2292
      %v2294 = vsel %vm1864, %v2254, 0.0
      %2295 = vadd.xlane.f32.xlu0 %v2294
      %v2296 = vpop.xlane.xlu0 %2295
      %v2297 = vsel %vm1864, %v2255, 0.0
      %2298 = vadd.xlane.f32.xlu0 %v2297
      %v2299 = vpop.xlane.xlu0 %2298
      %v2300 = vsel %vm1864, %v2256, 0.0
      %2301 = vadd.xlane.f32.xlu0 %v2300
      %v2302 = vpop.xlane.xlu0 %2301
      %v2303 = vsel %vm1864, %v2257, 0.0
      %2304 = vadd.xlane.f32.xlu0 %v2303
      %v2305 = vpop.xlane.xlu0 %2304
      %v2306 = vsel %vm1864, %v2258, 0.0
      %2307 = vadd.xlane.f32.xlu0 %v2306
      %v2308 = vpop.xlane.xlu0 %2307
      %v2309 = vsel %vm1864, %v2259, 0.0
      %2310 = vadd.xlane.f32.xlu0 %v2309
      %v2311 = vpop.xlane.xlu0 %2310
      %v2312 = vsel %vm1864, %v2260, 0.0
      %2313 = vadd.xlane.f32.xlu0 %v2312
      %v2314 = vpop.xlane.xlu0 %2313
      %v2315 = vsel %vm1864, %v2261, 0.0
      %2316 = vadd.xlane.f32.xlu0 %v2315
      %v2317 = vpop.xlane.xlu0 %2316
      %v2318 = vsel %vm1864, %v2262, 0.0
      %2319 = vadd.xlane.f32.xlu0 %v2318
      %v2320 = vpop.xlane.xlu0 %2319
      %v2321 = vsel %vm1864, %v2263, 0.0
      %2322 = vadd.xlane.f32.xlu0 %v2321
      %v2323 = vpop.xlane.xlu0 %2322
      %v2324 = vsel %vm1864, %v2264, 0.0
      %2325 = vadd.xlane.f32.xlu0 %v2324
      %v2326 = vpop.xlane.xlu0 %2325
      %v2327 = vsel %vm1864, %v2265, 0.0
      %2328 = vadd.xlane.f32.xlu0 %v2327
      %v2329 = vpop.xlane.xlu0 %2328
      %v2330 = vsel %vm1864, %v2266, 0.0
      %2331 = vadd.xlane.f32.xlu0 %v2330
      %v2332 = vpop.xlane.xlu0 %2331
      %v2333 = vsel %vm1864, %v2267, 0.0
      %2334 = vadd.xlane.f32.xlu0 %v2333
      %v2335 = vpop.xlane.xlu0 %2334
      %v2336 = vsel %vm1864, %v2268, 0.0
      %2337 = vadd.xlane.f32.xlu0 %v2336
      %v2338 = vpop.xlane.xlu0 %2337
      %v2339 = vsel %vm1864, %v2269, 0.0
      %2340 = vadd.xlane.f32.xlu0 %v2339
      %v2341 = vpop.xlane.xlu0 %2340
      %v2342 = vsel %vm1864, %v2270, 0.0
      %2343 = vadd.xlane.f32.xlu0 %v2342
      %v2344 = vpop.xlane.xlu0 %2343
      %v2345 = vsel %vm1864, %v2271, 0.0
      %2346 = vadd.xlane.f32.xlu0 %v2345
      %v2347 = vpop.xlane.xlu0 %2346
      %v2348 = vsel %vm1864, %v2272, 0.0
      %2349 = vadd.xlane.f32.xlu0 %v2348
      %v2350 = vpop.xlane.xlu0 %2349
      %v2351 = vsel %vm1864, %v2273, 0.0
      %2352 = vadd.xlane.f32.xlu0 %v2351
      %v2353 = vpop.xlane.xlu0 %2352
      %v2354 = vsel %vm1864, %v2274, 0.0
      %2355 = vadd.xlane.f32.xlu0 %v2354
      %v2356 = vpop.xlane.xlu0 %2355
      %v2357 = vsel %vm1864, %v2275, 0.0
      %2358 = vadd.xlane.f32.xlu0 %v2357
      %v2359 = vpop.xlane.xlu0 %2358
      %v2360 = vsel %vm1864, %v2276, 0.0
      %2361 = vadd.xlane.f32.xlu0 %v2360
      %v2362 = vpop.xlane.xlu0 %2361
      %v2363 = vsel %vm1864, %v2277, 0.0
      %2364 = vadd.xlane.f32.xlu0 %v2363
      %v2365 = vpop.xlane.xlu0 %2364
      %v2366 = vsel %vm1864, %v2278, 0.0
      %2367 = vadd.xlane.f32.xlu0 %v2366
      %v2368 = vpop.xlane.xlu0 %2367
      %v2369 = vsel %vm1864, %v2279, 0.0
      %2370 = vadd.xlane.f32.xlu0 %v2369
      %v2371 = vpop.xlane.xlu0 %2370
      %v2372 = vsel %vm1864, %v2280, 0.0
      %2373 = vadd.xlane.f32.xlu0 %v2372
      %v2374 = vpop.xlane.xlu0 %2373
      %v2375 = vsel %vm1864, %v2281, 0.0
      %2376 = vadd.xlane.f32.xlu0 %v2375
      %v2377 = vpop.xlane.xlu0 %2376
      %v2378 = vsub.f32 %v2284, %v1737
      %v2379 = vsub.f32 %v2287, %v1739
      %v2380 = vsub.f32 %v2290, %v1741
      %v2381 = vsub.f32 %v2293, %v1743
      %v2382 = vsub.f32 %v2296, %v1745
      %v2383 = vsub.f32 %v2299, %v1747
      %v2384 = vsub.f32 %v2302, %v1749
      %v2385 = vsub.f32 %v2305, %v1751
      %v2386 = vsub.f32 %v2308, %v1753
      %v2387 = vsub.f32 %v2311, %v1755
      %v2388 = vsub.f32 %v2314, %v1757
      %v2389 = vsub.f32 %v2317, %v1759
      %v2390 = vsub.f32 %v2320, %v1761
      %v2391 = vsub.f32 %v2323, %v1763
      %v2392 = vsub.f32 %v2326, %v1765
      %v2393 = vsub.f32 %v2329, %v1767
      %v2394 = vsub.f32 %v2332, %v1769
      %v2395 = vsub.f32 %v2335, %v1771
      %v2396 = vsub.f32 %v2338, %v1773
      %v2397 = vsub.f32 %v2341, %v1775
      %v2398 = vsub.f32 %v2344, %v1777
      %v2399 = vsub.f32 %v2347, %v1779
      %v2400 = vsub.f32 %v2350, %v1781
      %v2401 = vsub.f32 %v2353, %v1783
      %v2402 = vsub.f32 %v2356, %v1785
      %v2403 = vsub.f32 %v2359, %v1787
      %v2404 = vsub.f32 %v2362, %v1789
      %v2405 = vsub.f32 %v2365, %v1791
      %v2406 = vsub.f32 %v2368, %v1793
      %v2407 = vsub.f32 %v2371, %v1795
      %v2408 = vsub.f32 %v2374, %v1797
      %v2409 = vsub.f32 %v2377, %v1799
      %vm2410 = vcmp.eq.s32.totalorder %v1222, 0
      %vm2411 = vcmp.eq.s32.totalorder %v1222, 1
      %vm2412 = vcmp.eq.s32.totalorder %v1222, 2
      %v2413 = vsel %vm2412, %v2154, 0.0
      %v2414 = vsel %vm2412, %v2155, 0.0
      %v2415 = vsel %vm2412, %v2156, 0.0
      %v2416 = vsel %vm2412, %v2157, 0.0
      %v2417 = vsel %vm2412, %v2158, 0.0
      %v2418 = vsel %vm2412, %v2159, 0.0
      %v2419 = vsel %vm2412, %v2160, 0.0
      %v2420 = vsel %vm2412, %v2161, 0.0
      %v2421 = vsel %vm2412, %v2162, 0.0
      %v2422 = vsel %vm2412, %v2163, 0.0
      %v2423 = vsel %vm2412, %v2164, 0.0
      %v2424 = vsel %vm2412, %v2165, 0.0
      %v2425 = vsel %vm2412, %v2166, 0.0
      %v2426 = vsel %vm2412, %v2167, 0.0
      %v2427 = vsel %vm2412, %v2168, 0.0
      %v2428 = vsel %vm2412, %v2169, 0.0
      %v2429 = vsel %vm2412, %v2170, 0.0
      %v2430 = vsel %vm2412, %v2171, 0.0
      %v2431 = vsel %vm2412, %v2172, 0.0
      %v2432 = vsel %vm2412, %v2173, 0.0
      %v2433 = vsel %vm2412, %v2174, 0.0
      %v2434 = vsel %vm2412, %v2175, 0.0
      %v2435 = vsel %vm2412, %v2176, 0.0
      %v2436 = vsel %vm2412, %v2177, 0.0
      %v2437 = vsel %vm2412, %v2178, 0.0
      %v2438 = vsel %vm2412, %v2179, 0.0
      %v2439 = vsel %vm2412, %v2180, 0.0
      %v2440 = vsel %vm2412, %v2181, 0.0
      %v2441 = vsel %vm2412, %v2182, 0.0
      %v2442 = vsel %vm2412, %v2183, 0.0
      %v2443 = vsel %vm2412, %v2184, 0.0
      %v2444 = vsel %vm2412, %v2185, 0.0
      %v2445 = vsel %vm2411, %v2378, %v2413
      %v2446 = vsel %vm2411, %v2379, %v2414
      %v2447 = vsel %vm2411, %v2380, %v2415
      %v2448 = vsel %vm2411, %v2381, %v2416
      %v2449 = vsel %vm2411, %v2382, %v2417
      %v2450 = vsel %vm2411, %v2383, %v2418
      %v2451 = vsel %vm2411, %v2384, %v2419
      %v2452 = vsel %vm2411, %v2385, %v2420
      %v2453 = vsel %vm2411, %v2386, %v2421
      %v2454 = vsel %vm2411, %v2387, %v2422
      %v2455 = vsel %vm2411, %v2388, %v2423
      %v2456 = vsel %vm2411, %v2389, %v2424
      %v2457 = vsel %vm2411, %v2390, %v2425
      %v2458 = vsel %vm2411, %v2391, %v2426
      %v2459 = vsel %vm2411, %v2392, %v2427
      %v2460 = vsel %vm2411, %v2393, %v2428
      %v2461 = vsel %vm2411, %v2394, %v2429
      %v2462 = vsel %vm2411, %v2395, %v2430
      %v2463 = vsel %vm2411, %v2396, %v2431
      %v2464 = vsel %vm2411, %v2397, %v2432
      %v2465 = vsel %vm2411, %v2398, %v2433
      %v2466 = vsel %vm2411, %v2399, %v2434
      %v2467 = vsel %vm2411, %v2400, %v2435
      %v2468 = vsel %vm2411, %v2401, %v2436
      %v2469 = vsel %vm2411, %v2402, %v2437
      %v2470 = vsel %vm2411, %v2403, %v2438
      %v2471 = vsel %vm2411, %v2404, %v2439
      %v2472 = vsel %vm2411, %v2405, %v2440
      %v2473 = vsel %vm2411, %v2406, %v2441
      %v2474 = vsel %vm2411, %v2407, %v2442
      %v2475 = vsel %vm2411, %v2408, %v2443
      %v2476 = vsel %vm2411, %v2409, %v2444
      %2478 = vset.pattern.permute.xlu0 64
      %2479 = vperm.xlu0 %2478, %v1095
      %v2480 = vpop.permute.xlu0 %2479
      %2483 = vset.pattern.permute.xlu0 64
      %2484 = vperm.xlu0 %2483, %v1098
      %v2485 = vpop.permute.xlu0 %2484
      %2488 = vset.pattern.permute.xlu0 64
      %2489 = vperm.xlu0 %2488, %v1103
      %v2490 = vpop.permute.xlu0 %2489
      %2493 = vset.pattern.permute.xlu0 64
      %2494 = vperm.xlu0 %2493, %v1106
      %v2495 = vpop.permute.xlu0 %2494
      %2498 = vset.pattern.permute.xlu0 64
      %2499 = vperm.xlu0 %2498, %v1111
      %v2500 = vpop.permute.xlu0 %2499
      %2503 = vset.pattern.permute.xlu0 64
      %2504 = vperm.xlu0 %2503, %v1114
      %v2505 = vpop.permute.xlu0 %2504
      %2508 = vset.pattern.permute.xlu0 64
      %2509 = vperm.xlu0 %2508, %v1119
      %v2510 = vpop.permute.xlu0 %2509
      %2513 = vset.pattern.permute.xlu0 64
      %2514 = vperm.xlu0 %2513, %v1122
      %v2515 = vpop.permute.xlu0 %2514
      %2518 = vset.pattern.permute.xlu0 64
      %2519 = vperm.xlu0 %2518, %v1127
      %v2520 = vpop.permute.xlu0 %2519
      %2523 = vset.pattern.permute.xlu0 64
      %2524 = vperm.xlu0 %2523, %v1130
      %v2525 = vpop.permute.xlu0 %2524
      %2528 = vset.pattern.permute.xlu0 64
      %2529 = vperm.xlu0 %2528, %v1135
      %v2530 = vpop.permute.xlu0 %2529
      %2533 = vset.pattern.permute.xlu0 64
      %2534 = vperm.xlu0 %2533, %v1138
      %v2535 = vpop.permute.xlu0 %2534
      %2538 = vset.pattern.permute.xlu0 64
      %2539 = vperm.xlu0 %2538, %v1143
      %v2540 = vpop.permute.xlu0 %2539
      %2543 = vset.pattern.permute.xlu0 64
      %2544 = vperm.xlu0 %2543, %v1146
      %v2545 = vpop.permute.xlu0 %2544
      %2548 = vset.pattern.permute.xlu0 64
      %2549 = vperm.xlu0 %2548, %v1151
      %v2550 = vpop.permute.xlu0 %2549
      %2553 = vset.pattern.permute.xlu0 64
      %2554 = vperm.xlu0 %2553, %v1154
      %v2555 = vpop.permute.xlu0 %2554
      %2558 = vset.pattern.permute.xlu0 64
      %2559 = vperm.xlu0 %2558, %v1159
      %v2560 = vpop.permute.xlu0 %2559
      %2563 = vset.pattern.permute.xlu0 64
      %2564 = vperm.xlu0 %2563, %v1162
      %v2565 = vpop.permute.xlu0 %2564
      %2568 = vset.pattern.permute.xlu0 64
      %2569 = vperm.xlu0 %2568, %v1167
      %v2570 = vpop.permute.xlu0 %2569
      %2573 = vset.pattern.permute.xlu0 64
      %2574 = vperm.xlu0 %2573, %v1170
      %v2575 = vpop.permute.xlu0 %2574
      %2578 = vset.pattern.permute.xlu0 64
      %2579 = vperm.xlu0 %2578, %v1175
      %v2580 = vpop.permute.xlu0 %2579
      %2583 = vset.pattern.permute.xlu0 64
      %2584 = vperm.xlu0 %2583, %v1178
      %v2585 = vpop.permute.xlu0 %2584
      %2588 = vset.pattern.permute.xlu0 64
      %2589 = vperm.xlu0 %2588, %v1183
      %v2590 = vpop.permute.xlu0 %2589
      %2593 = vset.pattern.permute.xlu0 64
      %2594 = vperm.xlu0 %2593, %v1186
      %v2595 = vpop.permute.xlu0 %2594
      %2598 = vset.pattern.permute.xlu0 64
      %2599 = vperm.xlu0 %2598, %v1191
      %v2600 = vpop.permute.xlu0 %2599
      %2603 = vset.pattern.permute.xlu0 64
      %2604 = vperm.xlu0 %2603, %v1194
      %v2605 = vpop.permute.xlu0 %2604
      %2608 = vset.pattern.permute.xlu0 64
      %2609 = vperm.xlu0 %2608, %v1199
      %v2610 = vpop.permute.xlu0 %2609
      %2613 = vset.pattern.permute.xlu0 64
      %2614 = vperm.xlu0 %2613, %v1202
      %v2615 = vpop.permute.xlu0 %2614
      %2618 = vset.pattern.permute.xlu0 64
      %2619 = vperm.xlu0 %2618, %v1207
      %v2620 = vpop.permute.xlu0 %2619
      %2623 = vset.pattern.permute.xlu0 64
      %2624 = vperm.xlu0 %2623, %v1210
      %v2625 = vpop.permute.xlu0 %2624
      %2628 = vset.pattern.permute.xlu0 64
      %2629 = vperm.xlu0 %2628, %v1215
      %v2630 = vpop.permute.xlu0 %2629
      %2633 = vset.pattern.permute.xlu0 64
      %2634 = vperm.xlu0 %2633, %v1218
      %v2635 = vpop.permute.xlu0 %2634
      %v2637 = vsel %vm2410, %v2480, %v2445
      %v2638 = vsel %vm2410, %v2485, %v2446
      %v2639 = vsel %vm2410, %v2490, %v2447
      %v2640 = vsel %vm2410, %v2495, %v2448
      %v2641 = vsel %vm2410, %v2500, %v2449
      %v2642 = vsel %vm2410, %v2505, %v2450
      %v2643 = vsel %vm2410, %v2510, %v2451
      %v2644 = vsel %vm2410, %v2515, %v2452
      %v2645 = vsel %vm2410, %v2520, %v2453
      %v2646 = vsel %vm2410, %v2525, %v2454
      %v2647 = vsel %vm2410, %v2530, %v2455
      %v2648 = vsel %vm2410, %v2535, %v2456
      %v2649 = vsel %vm2410, %v2540, %v2457
      %v2650 = vsel %vm2410, %v2545, %v2458
      %v2651 = vsel %vm2410, %v2550, %v2459
      %v2652 = vsel %vm2410, %v2555, %v2460
      %v2653 = vsel %vm2410, %v2560, %v2461
      %v2654 = vsel %vm2410, %v2565, %v2462
      %v2655 = vsel %vm2410, %v2570, %v2463
      %v2656 = vsel %vm2410, %v2575, %v2464
      %v2657 = vsel %vm2410, %v2580, %v2465
      %v2658 = vsel %vm2410, %v2585, %v2466
      %v2659 = vsel %vm2410, %v2590, %v2467
      %v2660 = vsel %vm2410, %v2595, %v2468
      %v2661 = vsel %vm2410, %v2600, %v2469
      %v2662 = vsel %vm2410, %v2605, %v2470
      %v2663 = vsel %vm2410, %v2610, %v2471
      %v2664 = vsel %vm2410, %v2615, %v2472
      %v2665 = vsel %vm2410, %v2620, %v2473
      %v2666 = vsel %vm2410, %v2625, %v2474
      %v2667 = vsel %vm2410, %v2630, %v2475
      %v2668 = vsel %vm2410, %v2635, %v2476
      %2669 = vst.msk [vmem:[%s199] sm:$0xff] %vm1864, %v2637
      %2670 = vst.msk [vmem:[%s199 + $0x8] sm:$0xff] %vm1864, %v2638
      %2671 = vst.msk [vmem:[%s199 + $0x10] sm:$0xff] %vm1864, %v2639
      %2672 = vst.msk [vmem:[%s199 + $0x18] sm:$0xff] %vm1864, %v2640
      %2673 = vst.msk [vmem:[%s199 + $0x20] sm:$0xff] %vm1864, %v2641
      %2674 = vst.msk [vmem:[%s199 + $0x28] sm:$0xff] %vm1864, %v2642
      %2675 = vst.msk [vmem:[%s199 + $0x30] sm:$0xff] %vm1864, %v2643
      %2676 = vst.msk [vmem:[%s199 + $0x38] sm:$0xff] %vm1864, %v2644
      %2677 = vst.msk [vmem:[%s199 + $0x40] sm:$0xff] %vm1864, %v2645
      %2678 = vst.msk [vmem:[%s199 + $0x48] sm:$0xff] %vm1864, %v2646
      %2679 = vst.msk [vmem:[%s199 + $0x50] sm:$0xff] %vm1864, %v2647
      %2680 = vst.msk [vmem:[%s199 + $0x58] sm:$0xff] %vm1864, %v2648
      %2681 = vst.msk [vmem:[%s199 + $0x60] sm:$0xff] %vm1864, %v2649
      %2682 = vst.msk [vmem:[%s199 + $0x68] sm:$0xff] %vm1864, %v2650
      %2683 = vst.msk [vmem:[%s199 + $0x70] sm:$0xff] %vm1864, %v2651
      %2684 = vst.msk [vmem:[%s199 + $0x78] sm:$0xff] %vm1864, %v2652
      %2685 = vst.msk [vmem:[%s199 + $0x80] sm:$0xff] %vm1864, %v2653
      %2686 = vst.msk [vmem:[%s199 + $0x88] sm:$0xff] %vm1864, %v2654
      %2687 = vst.msk [vmem:[%s199 + $0x90] sm:$0xff] %vm1864, %v2655
      %2688 = vst.msk [vmem:[%s199 + $0x98] sm:$0xff] %vm1864, %v2656
      %2689 = vst.msk [vmem:[%s199 + $0xa0] sm:$0xff] %vm1864, %v2657
      %2690 = vst.msk [vmem:[%s199 + $0xa8] sm:$0xff] %vm1864, %v2658
      %2691 = vst.msk [vmem:[%s199 + $0xb0] sm:$0xff] %vm1864, %v2659
      %2692 = vst.msk [vmem:[%s199 + $0xb8] sm:$0xff] %vm1864, %v2660
      %2693 = vst.msk [vmem:[%s199 + $0xc0] sm:$0xff] %vm1864, %v2661
      %2694 = vst.msk [vmem:[%s199 + $0xc8] sm:$0xff] %vm1864, %v2662
      %2695 = vst.msk [vmem:[%s199 + $0xd0] sm:$0xff] %vm1864, %v2663
      %2696 = vst.msk [vmem:[%s199 + $0xd8] sm:$0xff] %vm1864, %v2664
      %2697 = vst.msk [vmem:[%s199 + $0xe0] sm:$0xff] %vm1864, %v2665
      %2698 = vst.msk [vmem:[%s199 + $0xe8] sm:$0xff] %vm1864, %v2666
      %2699 = vst.msk [vmem:[%s199 + $0xf0] sm:$0xff] %vm1864, %v2667
      %2700 = vst.msk [vmem:[%s199 + $0xf8] sm:$0xff] %vm1864, %v2668
      %s2701 = smul.u32 32, %s15
      %p2702 = scmp.lt.s32.totalorder %s2701, 63
      %s2703 = scalar_select %p2702, %s2701, 63
      %s2704 = smul.addr %s2703, 8
      %s2705 = scalar_lea.vmem %s4, %s2704
      // Predicated region
      $region37: #{tpu_custom_call.1} parent=35 // pred_check
        %p2706 = pneg %p122
      $region38: #{tpu_custom_call.1} parent=35 // pred_check_branch
        %2708 = sbr.rel (%p2706) target = $region40
      $region39: #{tpu_custom_call.1} parent=35 // pred_region
        %s2709 = smul.u32 32, %s15
      $region40: #{tpu_custom_call.1} parent=35 // pred_fallthru
        _
    $region36: #{tpu_custom_call.1} parent=5 // pred_fallthru
      _
    %p2710 = scmp.le.s32.totalorder 2, %s10
    // Predicated region
    $region41: #{tpu_custom_call.1} parent=5 // pred_check
      %p2711 = pneg %p2710
    $region42: #{tpu_custom_call.1} parent=5 // pred_check_branch
      %2713 = sbr.rel (%p2711) target = $region44
    $region43: #{tpu_custom_call.1} parent=5 // pred_region
      %s2714 = ssub.s32 %s10, 2
      // Predicated region
      $region45: #{tpu_custom_call.1} parent=43 // pred_check
        %p2715 = pneg %p128
      $region46: #{tpu_custom_call.1} parent=43 // pred_check_branch
        %2717 = sbr.rel (%p2715) target = $region48
      $region47: #{tpu_custom_call.1} parent=43 // pred_region
        %s2718 = smul.u32 32, %s16
        %p2719 = scmp.lt.s32.totalorder %s2718, 63
        %s2720 = scalar_select %p2719, %s2718, 63
        %s2721 = smul.addr %s2720, 8
        %s2722 = scalar_lea.vmem %s4, %s2721
      $region48: #{tpu_custom_call.1} parent=43 // pred_fallthru
        _
    $region44: #{tpu_custom_call.1} parent=5 // pred_fallthru
      _
  $region6: #{tpu_custom_call.1} parent=0 // loop_footer
    %s14 = sadd.s32 1, %s10
  $region7: #{tpu_custom_call.1} parent=0 // loop_footer_branch
    %9 = sbr.rel target = $region3
  $region8: #{tpu_custom_call.1} parent=0 // loop_exit
    _

</llo_original>
